<compile_context>
chip_gen: v5e
topology: v5e:2x2
jax: 0.10.0
libtpu: 0.0.40
codegen_flags: <defaults>
</compile_context>

<pallas_src>
import numpy as np
import jax
import jax.numpy as jnp
from jax import lax
from jax.experimental import pallas as pl
from jax.experimental.pallas import tpu as pltpu

PAD = 0  # Constants.PAD


# ---------------------------------------------------------------------------
# Sinusoid positional encoding table (mirrors the reference numpy code).
# ---------------------------------------------------------------------------
def get_sinusoid_encoding_table(n_position, d_hid, padding_idx=None):
    def cal_angle(position, hid_idx):
        return position / np.power(10000, 2 * (hid_idx // 2) / d_hid)

    def get_posi_angle_vec(position):
        return [cal_angle(position, hid_j) for hid_j in range(d_hid)]

    table = np.array([get_posi_angle_vec(p) for p in range(n_position)])
    table[:, 0::2] = np.sin(table[:, 0::2])
    table[:, 1::2] = np.cos(table[:, 1::2])
    if padding_idx is not None:
        table[padding_idx] = 0.0
    return np.asarray(table, dtype=np.float32)


# ---------------------------------------------------------------------------
# Fused decoder-stack Pallas kernel.
# ---------------------------------------------------------------------------
def _layer_norm(y, g, b, eps=1e-5):
    mu = jnp.mean(y, axis=-1, keepdims=True)
    var = jnp.mean((y - mu) ** 2, axis=-1, keepdims=True)
    return (y - mu) * lax.rsqrt(var + eps) * g + b


def make_decoder_kernel(n_head, d_k, d_v):
    H, dk, dv = n_head, d_k, d_v

    def attend(q, k, v, mask2d, wo, bo, g, be, residual):
        # q: (Lq, H*dk)  k: (Lk, H*dk)  v: (Lk, H*dv)  mask2d: (Lq, Lk)
        # Pack heads as a leading batch dim (static lane slices, cheap).
        q3 = jnp.stack([q[:, h * dk:(h + 1) * dk] for h in range(H)], axis=0)  # (H,Lq,dk)
        k3 = jnp.stack([k[:, h * dk:(h + 1) * dk] for h in range(H)], axis=0)  # (H,Lk,dk)
        v3 = jnp.stack([v[:, h * dv:(h + 1) * dv] for h in range(H)], axis=0)  # (H,Lk,dv)

        # Scores for all heads in one batched MXU call (1/sqrt(dk) folded into wq).
        s = lax.dot_general(q3, k3, (((2,), (2,)), ((0,), (0,))),
                            preferred_element_type=jnp.float32)                # (H,Lq,Lk)
        # Finite masked-fill: avoids NaN on fully-masked rows (PAD queries are
        # zeroed by the non-pad mask afterwards anyway).
        s = jnp.where(mask2d[None, :, :] > 0.0, jnp.float32(-1e30), s)
        s = s - jnp.max(s, axis=-1, keepdims=True)
        p = jnp.exp(s)
        p = p * pl.reciprocal(jnp.sum(p, axis=-1, keepdims=True), approx=True)

        ctx3 = lax.dot_general(p, v3, (((2,), (1,)), ((0,), (0,))),
                               preferred_element_type=jnp.float32)             # (H,Lq,dv)
        # concat-over-heads -> single full-contraction output projection
        ctx = jnp.concatenate([ctx3[h] for h in range(H)], axis=-1)            # (Lq,H*dv)
        o = jnp.dot(ctx, wo, preferred_element_type=jnp.float32) + bo
        return _layer_norm(o + residual, g, be)

    def kernel(x_ref, enc_ref, npm_ref, slf_m_ref, enc_m_ref,
               wqkv1, bqkv1, wo1, bo1, g1, be1,
               wq2, bq2, wkv2, bkv2, wo2, bo2, g2, be2,
               w1, b1, w2, b2, g3, be3,
               out_ref):
        layer = pl.program_id(1)

        # Layer 0: seed the resident output block with the embeddings.
        @pl.when(layer == 0)
        def _():
            out_ref[...] = x_ref[...]

        x = out_ref[0]       # (Lq, D) activation carried across the layer axis
        enc = enc_ref[0]     # (Lk, D)
        npm = npm_ref[0]     # (Lq, 1)

        # --- self attention (fused Q|K|V projection: one matmul) ---
        qkv = jnp.dot(x, wqkv1[0], preferred_element_type=jnp.float32) + bqkv1[0]
        q = qkv[:, :H * dk]
        k = qkv[:, H * dk:2 * H * dk]
        v = qkv[:, 2 * H * dk:]
        y = attend(q, k, v, slf_m_ref[0], wo1[0], bo1[0], g1[0], be1[0], residual=x)
        y = y * npm

        # --- encoder-decoder attention (fused K|V projection) ---
        q = jnp.dot(y, wq2[0], preferred_element_type=jnp.float32) + bq2[0]
        kv = jnp.dot(enc, wkv2[0], preferred_element_type=jnp.float32) + bkv2[0]
        k = kv[:, :H * dk]
        v = kv[:, H * dk:]
        y = attend(q, k, v, enc_m_ref[0], wo2[0], bo2[0], g2[0], be2[0], residual=y)
        y = y * npm

        # --- position-wise FFN (Conv1d kernel-size 1 == linear) ---
        h1 = jnp.maximum(
            jnp.dot(y, w1[0], preferred_element_type=jnp.float32) + b1[0], 0.0)
        h2 = jnp.dot(h1, w2[0], preferred_element_type=jnp.float32) + b2[0]
        y = _layer_norm(h2 + y, g3[0], be3[0]) * npm

        out_ref[0] = y

    return kernel


# ---------------------------------------------------------------------------
# Decoder forward (mask + embedding glue in plain JAX, whole stack in Pallas).
# ---------------------------------------------------------------------------
def decoder_forward(tgt_seq, tgt_pos, src_seq, enc_output, params,
                    n_head, d_k, d_v):
    B, Lq = tgt_seq.shape
    Lk = src_seq.shape[1]
    D = params["word_emb"].shape[1]

    # get_non_pad_mask
    non_pad_mask = (tgt_seq != PAD).astype(jnp.float32)[:, :, None]            # (B,Lq,1)
    # get_subsequent_mask + get_attn_key_pad_mask
    subseq = jnp.triu(jnp.ones((Lq, Lq), jnp.float32), k=1)                    # (Lq,Lq)
    keypad = (tgt_seq == PAD).astype(jnp.float32)[:, None, :]                  # (B,1,Lq)
    slf_attn_mask = ((keypad + subseq[None, :, :]) > 0).astype(jnp.float32)    # (B,Lq,Lq)
    dec_enc_attn_mask = jnp.broadcast_to(
        (src_seq == PAD).astype(jnp.float32)[:, None, :], (B, Lq, Lk)
    ).astype(jnp.float32)                                                      # (B,Lq,Lk)

    # embedding lookups (gather) kept as JAX glue
    dec = (params["word_emb"][tgt_seq] + params["pos_enc"][tgt_pos]).astype(jnp.float32)

    weights = params["stacked"]          # 20 arrays, each with leading layer axis
    n_layers = weights[0].shape[0]

    acts = [dec, enc_output.astype(jnp.float32), non_pad_mask,
            slf_attn_mask, dec_enc_attn_mask]

    def act_spec(a):   # per-batch block, constant across the layer axis
        return pl.BlockSpec((1,) + a.shape[1:], lambda b, l: (b, 0, 0))

    def w_spec(a):     # one layer's weights at a time (streamed / double-buffered)
        return pl.BlockSpec((1,) + a.shape[1:], lambda b, l: (l, 0, 0))

    in_specs = [act_spec(a) for a in acts] + [w_spec(w) for w in weights]
    out_spec = pl.BlockSpec((1, Lq, D), lambda b, l: (b, 0, 0))

    kernel = make_decoder_kernel(n_head, d_k, d_v)
    out = pl.pallas_call(
        kernel,
        out_shape=jax.ShapeDtypeStruct((B, Lq, D), jnp.float32),
        grid_spec=pltpu.PrefetchScalarGridSpec(
            num_scalar_prefetch=0,
            grid=(B, n_layers),
            in_specs=in_specs,
            out_specs=out_spec),
        compiler_params=pltpu.CompilerParams(
            dimension_semantics=("parallel", "arbitrary")),
    )(*acts, *weights)
    return (out,)


# ---------------------------------------------------------------------------
# Deterministic parameter initialization (shapes from the module's __init__).
# Per-layer weights are pre-fused (QKV / KV concatenated, 1/sqrt(d_k) folded
# into wq) and stacked along a leading layer axis for in-kernel streaming.
# ---------------------------------------------------------------------------
def init_params(key, n_vocab, n_position, d_model, d_inner,
                n_head, d_k, d_v, n_layers):
    keys = jax.random.split(key, 1 + n_layers)
    emb = 0.02 * jax.random.normal(keys[0], (n_vocab, d_model), jnp.float32)
    emb = emb.at[PAD].set(0.0)  # padding_idx
    pos = jnp.asarray(get_sinusoid_encoding_table(n_position, d_model, padding_idx=0))

    def lin(kk, fi, fo):
        s = 1.0 / np.sqrt(fi)
        return jax.random.uniform(kk, (fi, fo), jnp.float32, -s, s)

    scale = 1.0 / np.sqrt(d_k)   # ScaledDotProductAttention temperature, folded offline
    Hdk = n_head * d_k
    Hdv = n_head * d_v

    per_layer = []
    for i in range(n_layers):
        k = jax.random.split(keys[1 + i], 10)
        ones = jnp.ones((1, d_model), jnp.float32)
        zeros = jnp.zeros((1, d_model), jnp.float32)

        # --- self attention: fused Q|K|V, scale folded into wq ---
        wq1 = lin(k[0], d_model, Hdk) * scale
        wk1 = lin(k[1], d_model, Hdk)
        wv1 = lin(k[2], d_model, Hdv)
        wqkv1 = jnp.concatenate([wq1, wk1, wv1], axis=1)
        bqkv1 = jnp.zeros((1, 2 * Hdk + Hdv), jnp.float32)
        wo1 = lin(k[3], Hdv, d_model)
        bo1 = zeros

        # --- encoder-decoder attention: q separate, fused K|V over encoder ---
        wq2 = lin(k[4], d_model, Hdk) * scale
        bq2 = jnp.zeros((1, Hdk), jnp.float32)
        wk2 = lin(k[5], d_model, Hdk)
        wv2 = lin(k[6], d_model, Hdv)
        wkv2 = jnp.concatenate([wk2, wv2], axis=1)
        bkv2 = jnp.zeros((1, Hdk + Hdv), jnp.float32)
        wo2 = lin(k[7], Hdv, d_model)
        bo2 = zeros

        # --- position-wise FFN (Conv1d k=1 weights stored as (in, out)) ---
        w1 = lin(k[8], d_model, d_inner)
        b1 = jnp.zeros((1, d_inner), jnp.float32)
        w2 = lin(k[9], d_inner, d_model)
        b2 = zeros

        per_layer.append((wqkv1, bqkv1, wo1, bo1, ones, zeros,
                          wq2, bq2, wkv2, bkv2, wo2, bo2, ones, zeros,
                          w1, b1, w2, b2, ones, zeros))

    n_params = len(per_layer[0])
    stacked = [jnp.stack([lp[j] for lp in per_layer], axis=0) for j in range(n_params)]
    return {"word_emb": emb, "pos_enc": pos, "stacked": stacked}


# ---------------------------------------------------------------------------
if __name__ == "__main__":
    key = jax.random.PRNGKey(0)
    B, Lq, Lsrc = 2, 8, 8
    n_tgt_vocab, len_max_seq = 40, 16
    d_model = d_word_vec = 32
    n_layers, n_head, d_k, d_v, d_inner = 2, 2, 16, 16, 64

    k1, k2, k3, k4 = jax.random.split(key, 4)
    # no PAD tokens in this synthetic example (avoids fully-masked softmax rows)
    tgt_seq = jax.random.randint(k1, (B, Lq), 1, n_tgt_vocab)
    src_seq = jax.random.randint(k2, (B, Lsrc), 1, n_tgt_vocab)
    tgt_pos = jnp.tile(jnp.arange(1, Lq + 1, dtype=jnp.int32)[None, :], (B, 1))
    enc_output = jax.random.normal(k3, (B, Lsrc, d_model), jnp.float32)

    params = init_params(k4, n_tgt_vocab, len_max_seq + 1, d_model, d_inner,
                         n_head, d_k, d_v, n_layers)

    (dec_out,) = decoder_forward(tgt_seq, tgt_pos, src_seq, enc_output, params,
                                 n_head, d_k, d_v)
    jax.block_until_ready(dec_out)

    assert dec_out.shape == (B, Lq, d_model), dec_out.shape
    assert bool(jnp.all(jnp.isfinite(dec_out)))
    # TODO(synk): production configs (d_model>=128, long seq) should also tile
    # Lq/Lk with an online-softmax accumulator and cast matmul inputs to bf16.
    print("KERNEL_OK")
</pallas_src>

<mosaic_0001>
module attributes {stable_mosaic.version = 11 : i64} {
  func.func @kernel(%arg0: i32, %arg1: i32, %arg2: memref<1x8x32xf32, #tpu.memory_space<vmem>>, %arg3: memref<1x8x32xf32, #tpu.memory_space<vmem>>, %arg4: memref<1x8x1xf32, #tpu.memory_space<vmem>>, %arg5: memref<1x8x8xf32, #tpu.memory_space<vmem>>, %arg6: memref<1x8x8xf32, #tpu.memory_space<vmem>>, %arg7: memref<1x32x96xf32, #tpu.memory_space<vmem>>, %arg8: memref<1x1x96xf32, #tpu.memory_space<vmem>>, %arg9: memref<1x32x32xf32, #tpu.memory_space<vmem>>, %arg10: memref<1x1x32xf32, #tpu.memory_space<vmem>>, %arg11: memref<1x1x32xf32, #tpu.memory_space<vmem>>, %arg12: memref<1x1x32xf32, #tpu.memory_space<vmem>>, %arg13: memref<1x32x32xf32, #tpu.memory_space<vmem>>, %arg14: memref<1x1x32xf32, #tpu.memory_space<vmem>>, %arg15: memref<1x32x64xf32, #tpu.memory_space<vmem>>, %arg16: memref<1x1x64xf32, #tpu.memory_space<vmem>>, %arg17: memref<1x32x32xf32, #tpu.memory_space<vmem>>, %arg18: memref<1x1x32xf32, #tpu.memory_space<vmem>>, %arg19: memref<1x1x32xf32, #tpu.memory_space<vmem>>, %arg20: memref<1x1x32xf32, #tpu.memory_space<vmem>>, %arg21: memref<1x32x64xf32, #tpu.memory_space<vmem>>, %arg22: memref<1x1x64xf32, #tpu.memory_space<vmem>>, %arg23: memref<1x64x32xf32, #tpu.memory_space<vmem>>, %arg24: memref<1x1x32xf32, #tpu.memory_space<vmem>>, %arg25: memref<1x1x32xf32, #tpu.memory_space<vmem>>, %arg26: memref<1x1x32xf32, #tpu.memory_space<vmem>>, %arg27: memref<1x8x32xf32, #tpu.memory_space<vmem>>) attributes {dimension_semantics = [#tpu.dimension_semantics<parallel>, #tpu.dimension_semantics<arbitrary>], iteration_bounds = array<i64: 2, 2>, scalar_prefetch = 0 : i64, scratch_operands = 0 : i64, tpu.core_type = #tpu.core_type<tc>, window_params = [{transform_indices = @transform_0, window_bounds = array<i64: 1, 8, 32>}, {transform_indices = @transform_1, window_bounds = array<i64: 1, 8, 32>}, {transform_indices = @transform_2, window_bounds = array<i64: 1, 8, 1>}, {transform_indices = @transform_3, window_bounds = array<i64: 1, 8, 8>}, {transform_indices = @transform_4, window_bounds = array<i64: 1, 8, 8>}, {transform_indices = @transform_5, window_bounds = array<i64: 1, 32, 96>}, {transform_indices = @transform_6, window_bounds = array<i64: 1, 1, 96>}, {transform_indices = @transform_7, window_bounds = array<i64: 1, 32, 32>}, {transform_indices = @transform_8, window_bounds = array<i64: 1, 1, 32>}, {transform_indices = @transform_9, window_bounds = array<i64: 1, 1, 32>}, {transform_indices = @transform_10, window_bounds = array<i64: 1, 1, 32>}, {transform_indices = @transform_11, window_bounds = array<i64: 1, 32, 32>}, {transform_indices = @transform_12, window_bounds = array<i64: 1, 1, 32>}, {transform_indices = @transform_13, window_bounds = array<i64: 1, 32, 64>}, {transform_indices = @transform_14, window_bounds = array<i64: 1, 1, 64>}, {transform_indices = @transform_15, window_bounds = array<i64: 1, 32, 32>}, {transform_indices = @transform_16, window_bounds = array<i64: 1, 1, 32>}, {transform_indices = @transform_17, window_bounds = array<i64: 1, 1, 32>}, {transform_indices = @transform_18, window_bounds = array<i64: 1, 1, 32>}, {transform_indices = @transform_19, window_bounds = array<i64: 1, 32, 64>}, {transform_indices = @transform_20, window_bounds = array<i64: 1, 1, 64>}, {transform_indices = @transform_21, window_bounds = array<i64: 1, 64, 32>}, {transform_indices = @transform_22, window_bounds = array<i64: 1, 1, 32>}, {transform_indices = @transform_23, window_bounds = array<i64: 1, 1, 32>}, {transform_indices = @transform_24, window_bounds = array<i64: 1, 1, 32>}, {transform_indices = @transform_25, window_bounds = array<i64: 1, 8, 32>}]} {
    %c0_i32 = arith.constant 0 : i32
    %0 = arith.cmpi eq, %arg1, %c0_i32 : i32
    %1 = arith.extui %0 : i1 to i32
    %c0_i32_0 = arith.constant 0 : i32
    %2 = arith.cmpi ne, %1, %c0_i32_0 : i32
    scf.if %2 {
      %c0_112 = arith.constant 0 : index
      %c0_113 = arith.constant 0 : index
      %c0_114 = arith.constant 0 : index
      %237 = vector.load %arg2[%c0_112, %c0_113, %c0_114] : memref<1x8x32xf32, #tpu.memory_space<vmem>>, vector<1x8x32xf32>
      %c0_115 = arith.constant 0 : index
      %c0_116 = arith.constant 0 : index
      %c0_117 = arith.constant 0 : index
      %238 = vector.load %arg27[%c0_115, %c0_116, %c0_117] : memref<1x8x32xf32, #tpu.memory_space<vmem>>, vector<1x8x32xf32>
      tpu.vector_store %arg27[%c0_115, %c0_116, %c0_117], %237 {strides = array<i32>} : memref<1x8x32xf32, #tpu.memory_space<vmem>>, vector<1x8x32xf32>,
    } else {
    }
    %c0 = arith.constant 0 : index
    %c0_1 = arith.constant 0 : index
    %c0_2 = arith.constant 0 : index
    %3 = vector.load %arg27[%c0, %c0_1, %c0_2] : memref<1x8x32xf32, #tpu.memory_space<vmem>>, vector<1x8x32xf32>
    %4 = vector.shape_cast %3 : vector<1x8x32xf32> to vector<8x32xf32>
    %c0_3 = arith.constant 0 : index
    %c0_4 = arith.constant 0 : index
    %c0_5 = arith.constant 0 : index
    %5 = vector.load %arg3[%c0_3, %c0_4, %c0_5] : memref<1x8x32xf32, #tpu.memory_space<vmem>>, vector<1x8x32xf32>
    %6 = vector.shape_cast %5 : vector<1x8x32xf32> to vector<8x32xf32>
    %c0_6 = arith.constant 0 : index
    %c0_7 = arith.constant 0 : index
    %c0_8 = arith.constant 0 : index
    %7 = vector.load %arg4[%c0_6, %c0_7, %c0_8] : memref<1x8x1xf32, #tpu.memory_space<vmem>>, vector<1x8x1xf32>
    %8 = vector.shape_cast %7 : vector<1x8x1xf32> to vector<8x1xf32>
    %c0_9 = arith.constant 0 : index
    %c0_10 = arith.constant 0 : index
    %c0_11 = arith.constant 0 : index
    %9 = vector.load %arg7[%c0_9, %c0_10, %c0_11] : memref<1x32x96xf32, #tpu.memory_space<vmem>>, vector<1x32x96xf32>
    %10 = vector.shape_cast %9 : vector<1x32x96xf32> to vector<32x96xf32>
    %cst = arith.constant dense<0.000000e+00> : vector<8x96xf32>
    %11 = tpu.matmul %4, %10, %cst {dimension_numbers = #tpu.dot_dimension_numbers<[1], [0], [0], [1], [0, 0, 1, 1], [], []>} : vector<8x32xf32>, vector<32x96xf32>, vector<8x96xf32> -> vector<8x96xf32>
    %c0_12 = arith.constant 0 : index
    %c0_13 = arith.constant 0 : index
    %c0_14 = arith.constant 0 : index
    %12 = vector.load %arg8[%c0_12, %c0_13, %c0_14] : memref<1x1x96xf32, #tpu.memory_space<vmem>>, vector<1x1x96xf32>
    %13 = vector.shape_cast %12 : vector<1x1x96xf32> to vector<1x96xf32>
    %14 = vector.broadcast %13 : vector<1x96xf32> to vector<8x96xf32>
    %15 = arith.addf %11, %14 : vector<8x96xf32>
    %16 = vector.extract_strided_slice %15 {offsets = [0, 0], sizes = [8, 32], strides = [1, 1]} : vector<8x96xf32> to vector<8x32xf32>
    %17 = vector.extract_strided_slice %15 {offsets = [0, 32], sizes = [8, 32], strides = [1, 1]} : vector<8x96xf32> to vector<8x32xf32>
    %18 = vector.extract_strided_slice %15 {offsets = [0, 64], sizes = [8, 32], strides = [1, 1]} : vector<8x96xf32> to vector<8x32xf32>
    %c0_15 = arith.constant 0 : index
    %c0_16 = arith.constant 0 : index
    %c0_17 = arith.constant 0 : index
    %19 = vector.load %arg5[%c0_15, %c0_16, %c0_17] : memref<1x8x8xf32, #tpu.memory_space<vmem>>, vector<1x8x8xf32>
    %20 = vector.shape_cast %19 : vector<1x8x8xf32> to vector<8x8xf32>
    %c0_18 = arith.constant 0 : index
    %c0_19 = arith.constant 0 : index
    %c0_20 = arith.constant 0 : index
    %21 = vector.load %arg9[%c0_18, %c0_19, %c0_20] : memref<1x32x32xf32, #tpu.memory_space<vmem>>, vector<1x32x32xf32>
    %22 = vector.shape_cast %21 : vector<1x32x32xf32> to vector<32x32xf32>
    %c0_21 = arith.constant 0 : index
    %c0_22 = arith.constant 0 : index
    %c0_23 = arith.constant 0 : index
    %23 = vector.load %arg10[%c0_21, %c0_22, %c0_23] : memref<1x1x32xf32, #tpu.memory_space<vmem>>, vector<1x1x32xf32>
    %24 = vector.shape_cast %23 : vector<1x1x32xf32> to vector<1x32xf32>
    %c0_24 = arith.constant 0 : index
    %c0_25 = arith.constant 0 : index
    %c0_26 = arith.constant 0 : index
    %25 = vector.load %arg11[%c0_24, %c0_25, %c0_26] : memref<1x1x32xf32, #tpu.memory_space<vmem>>, vector<1x1x32xf32>
    %26 = vector.shape_cast %25 : vector<1x1x32xf32> to vector<1x32xf32>
    %c0_27 = arith.constant 0 : index
    %c0_28 = arith.constant 0 : index
    %c0_29 = arith.constant 0 : index
    %27 = vector.load %arg12[%c0_27, %c0_28, %c0_29] : memref<1x1x32xf32, #tpu.memory_space<vmem>>, vector<1x1x32xf32>
    %28 = vector.shape_cast %27 : vector<1x1x32xf32> to vector<1x32xf32>
    %29 = vector.extract_strided_slice %16 {offsets = [0, 0], sizes = [8, 16], strides = [1, 1]} : vector<8x32xf32> to vector<8x16xf32>
    %30 = vector.extract_strided_slice %16 {offsets = [0, 16], sizes = [8, 16], strides = [1, 1]} : vector<8x32xf32> to vector<8x16xf32>
    %31 = vector.shape_cast %29 : vector<8x16xf32> to vector<1x8x16xf32>
    %32 = vector.shape_cast %30 : vector<8x16xf32> to vector<1x8x16xf32>
    %33 = tpu.concatenate %31, %32 in 0 : vector<1x8x16xf32>, vector<1x8x16xf32> -> vector<2x8x16xf32>
    %34 = vector.extract_strided_slice %17 {offsets = [0, 0], sizes = [8, 16], strides = [1, 1]} : vector<8x32xf32> to vector<8x16xf32>
    %35 = vector.extract_strided_slice %17 {offsets = [0, 16], sizes = [8, 16], strides = [1, 1]} : vector<8x32xf32> to vector<8x16xf32>
    %36 = vector.shape_cast %34 : vector<8x16xf32> to vector<1x8x16xf32>
    %37 = vector.shape_cast %35 : vector<8x16xf32> to vector<1x8x16xf32>
    %38 = tpu.concatenate %36, %37 in 0 : vector<1x8x16xf32>, vector<1x8x16xf32> -> vector<2x8x16xf32>
    %39 = vector.extract_strided_slice %18 {offsets = [0, 0], sizes = [8, 16], strides = [1, 1]} : vector<8x32xf32> to vector<8x16xf32>
    %40 = vector.extract_strided_slice %18 {offsets = [0, 16], sizes = [8, 16], strides = [1, 1]} : vector<8x32xf32> to vector<8x16xf32>
    %41 = vector.shape_cast %39 : vector<8x16xf32> to vector<1x8x16xf32>
    %42 = vector.shape_cast %40 : vector<8x16xf32> to vector<1x8x16xf32>
    %43 = tpu.concatenate %41, %42 in 0 : vector<1x8x16xf32>, vector<1x8x16xf32> -> vector<2x8x16xf32>
    %cst_30 = arith.constant dense<0.000000e+00> : vector<2x8x8xf32>
    %44 = tpu.matmul %33, %38, %cst_30 {dimension_numbers = #tpu.dot_dimension_numbers<[2], [2], [1], [1], [0, 0, 0, 1, 1, 1], [0], [0]>} : vector<2x8x16xf32>, vector<2x8x16xf32>, vector<2x8x8xf32> -> vector<2x8x8xf32>
    %45 = vector.shape_cast %20 : vector<8x8xf32> to vector<1x8x8xf32>
    %cst_31 = arith.constant 0.000000e+00 : f32
    %46 = vector.broadcast %cst_31 : f32 to vector<1x8x8xf32>
    %47 = arith.cmpf ogt, %45, %46 : vector<1x8x8xf32>
    %cst_32 = arith.constant -1.000000e+30 : f32
    %48 = vector.shape_cast %47 : vector<1x8x8xi1> to vector<1x8x8xi1>
    %49 = vector.broadcast %48 : vector<1x8x8xi1> to vector<2x8x8xi1>
    %50 = vector.broadcast %cst_32 : f32 to vector<2x8x8xf32>
    %51 = arith.select %49, %50, %44 : vector<2x8x8xi1>, vector<2x8x8xf32>
    %cst_33 = arith.constant dense<0xFF800000> : vector<2x8xf32>
    %52 = vector.multi_reduction <maximumf>, %51, %cst_33 [2] : vector<2x8x8xf32> to vector<2x8xf32>
    %53 = vector.shape_cast %52 : vector<2x8xf32> to vector<2x8x1xf32>
    %54 = vector.broadcast %53 : vector<2x8x1xf32> to vector<2x8x8xf32>
    %55 = arith.subf %51, %54 : vector<2x8x8xf32>
    %56 = math.exp %55 : vector<2x8x8xf32>
    %cst_34 = arith.constant dense<0.000000e+00> : vector<2x8xf32>
    %57 = vector.multi_reduction <add>, %56, %cst_34 [2] : vector<2x8x8xf32> to vector<2x8xf32>
    %58 = vector.shape_cast %57 : vector<2x8xf32> to vector<2x8x1xf32>
    %59 = tpu.reciprocal %58 {approx = true} : vector<2x8x1xf32> -> vector<2x8x1xf32>
    %60 = vector.broadcast %59 : vector<2x8x1xf32> to vector<2x8x8xf32>
    %61 = arith.mulf %56, %60 : vector<2x8x8xf32>
    %cst_35 = arith.constant dense<0.000000e+00> : vector<2x8x16xf32>
    %62 = tpu.matmul %61, %43, %cst_35 {dimension_numbers = #tpu.dot_dimension_numbers<[2], [1], [1], [2], [0, 0, 0, 1, 1, 2], [0], [0]>} : vector<2x8x8xf32>, vector<2x8x16xf32>, vector<2x8x16xf32> -> vector<2x8x16xf32>
    %63 = vector.extract_strided_slice %62 {offsets = [0, 0, 0], sizes = [1, 8, 16], strides = [1, 1, 1]} : vector<2x8x16xf32> to vector<1x8x16xf32>
    %64 = vector.shape_cast %63 : vector<1x8x16xf32> to vector<8x16xf32>
    %65 = vector.extract_strided_slice %62 {offsets = [1, 0, 0], sizes = [1, 8, 16], strides = [1, 1, 1]} : vector<2x8x16xf32> to vector<1x8x16xf32>
    %66 = vector.shape_cast %65 : vector<1x8x16xf32> to vector<8x16xf32>
    %67 = tpu.concatenate %64, %66 in 1 : vector<8x16xf32>, vector<8x16xf32> -> vector<8x32xf32>
    %cst_36 = arith.constant dense<0.000000e+00> : vector<8x32xf32>
    %68 = tpu.matmul %67, %22, %cst_36 {dimension_numbers = #tpu.dot_dimension_numbers<[1], [0], [0], [1], [0, 0, 1, 1], [], []>} : vector<8x32xf32>, vector<32x32xf32>, vector<8x32xf32> -> vector<8x32xf32>
    %69 = vector.broadcast %24 : vector<1x32xf32> to vector<8x32xf32>
    %70 = arith.addf %68, %69 : vector<8x32xf32>
    %71 = arith.addf %70, %4 : vector<8x32xf32>
    %cst_37 = arith.constant dense<0.000000e+00> : vector<8xf32>
    %72 = vector.multi_reduction <add>, %71, %cst_37 [1] : vector<8x32xf32> to vector<8xf32>
    %73 = vector.shape_cast %72 : vector<8xf32> to vector<8x1xf32>
    %cst_38 = arith.constant 3.200000e+01 : f32
    %74 = vector.broadcast %cst_38 : f32 to vector<8x1xf32>
    %75 = arith.divf %73, %74 : vector<8x1xf32>
    %76 = vector.broadcast %75 : vector<8x1xf32> to vector<8x32xf32>
    %77 = arith.subf %71, %76 : vector<8x32xf32>
    %78 = arith.mulf %77, %77 : vector<8x32xf32>
    %cst_39 = arith.constant dense<0.000000e+00> : vector<8xf32>
    %79 = vector.multi_reduction <add>, %78, %cst_39 [1] : vector<8x32xf32> to vector<8xf32>
    %80 = vector.shape_cast %79 : vector<8xf32> to vector<8x1xf32>
    %cst_40 = arith.constant 3.200000e+01 : f32
    %81 = vector.broadcast %cst_40 : f32 to vector<8x1xf32>
    %82 = arith.divf %80, %81 : vector<8x1xf32>
    %83 = vector.broadcast %75 : vector<8x1xf32> to vector<8x32xf32>
    %84 = arith.subf %71, %83 : vector<8x32xf32>
    %cst_41 = arith.constant 9.99999974E-6 : f32
    %85 = vector.broadcast %cst_41 : f32 to vector<8x1xf32>
    %86 = arith.addf %82, %85 : vector<8x1xf32>
    %87 = math.rsqrt %86 : vector<8x1xf32>
    %88 = vector.broadcast %87 : vector<8x1xf32> to vector<8x32xf32>
    %89 = arith.mulf %84, %88 : vector<8x32xf32>
    %90 = vector.broadcast %26 : vector<1x32xf32> to vector<8x32xf32>
    %91 = arith.mulf %89, %90 : vector<8x32xf32>
    %92 = vector.broadcast %28 : vector<1x32xf32> to vector<8x32xf32>
    %93 = arith.addf %91, %92 : vector<8x32xf32>
    %94 = vector.broadcast %8 : vector<8x1xf32> to vector<8x32xf32>
    %95 = arith.mulf %93, %94 : vector<8x32xf32>
    %c0_42 = arith.constant 0 : index
    %c0_43 = arith.constant 0 : index
    %c0_44 = arith.constant 0 : index
    %96 = vector.load %arg13[%c0_42, %c0_43, %c0_44] : memref<1x32x32xf32, #tpu.memory_space<vmem>>, vector<1x32x32xf32>
    %97 = vector.shape_cast %96 : vector<1x32x32xf32> to vector<32x32xf32>
    %cst_45 = arith.constant dense<0.000000e+00> : vector<8x32xf32>
    %98 = tpu.matmul %95, %97, %cst_45 {dimension_numbers = #tpu.dot_dimension_numbers<[1], [0], [0], [1], [0, 0, 1, 1], [], []>} : vector<8x32xf32>, vector<32x32xf32>, vector<8x32xf32> -> vector<8x32xf32>
    %c0_46 = arith.constant 0 : index
    %c0_47 = arith.constant 0 : index
    %c0_48 = arith.constant 0 : index
    %99 = vector.load %arg14[%c0_46, %c0_47, %c0_48] : memref<1x1x32xf32, #tpu.memory_space<vmem>>, vector<1x1x32xf32>
    %100 = vector.shape_cast %99 : vector<1x1x32xf32> to vector<1x32xf32>
    %101 = vector.broadcast %100 : vector<1x32xf32> to vector<8x32xf32>
    %102 = arith.addf %98, %101 : vector<8x32xf32>
    %c0_49 = arith.constant 0 : index
    %c0_50 = arith.constant 0 : index
    %c0_51 = arith.constant 0 : index
    %103 = vector.load %arg15[%c0_49, %c0_50, %c0_51] : memref<1x32x64xf32, #tpu.memory_space<vmem>>, vector<1x32x64xf32>
    %104 = vector.shape_cast %103 : vector<1x32x64xf32> to vector<32x64xf32>
    %cst_52 = arith.constant dense<0.000000e+00> : vector<8x64xf32>
    %105 = tpu.matmul %6, %104, %cst_52 {dimension_numbers = #tpu.dot_dimension_numbers<[1], [0], [0], [1], [0, 0, 1, 1], [], []>} : vector<8x32xf32>, vector<32x64xf32>, vector<8x64xf32> -> vector<8x64xf32>
    %c0_53 = arith.constant 0 : index
    %c0_54 = arith.constant 0 : index
    %c0_55 = arith.constant 0 : index
    %106 = vector.load %arg16[%c0_53, %c0_54, %c0_55] : memref<1x1x64xf32, #tpu.memory_space<vmem>>, vector<1x1x64xf32>
    %107 = vector.shape_cast %106 : vector<1x1x64xf32> to vector<1x64xf32>
    %108 = vector.broadcast %107 : vector<1x64xf32> to vector<8x64xf32>
    %109 = arith.addf %105, %108 : vector<8x64xf32>
    %110 = vector.extract_strided_slice %109 {offsets = [0, 0], sizes = [8, 32], strides = [1, 1]} : vector<8x64xf32> to vector<8x32xf32>
    %111 = vector.extract_strided_slice %109 {offsets = [0, 32], sizes = [8, 32], strides = [1, 1]} : vector<8x64xf32> to vector<8x32xf32>
    %c0_56 = arith.constant 0 : index
    %c0_57 = arith.constant 0 : index
    %c0_58 = arith.constant 0 : index
    %112 = vector.load %arg6[%c0_56, %c0_57, %c0_58] : memref<1x8x8xf32, #tpu.memory_space<vmem>>, vector<1x8x8xf32>
    %113 = vector.shape_cast %112 : vector<1x8x8xf32> to vector<8x8xf32>
    %c0_59 = arith.constant 0 : index
    %c0_60 = arith.constant 0 : index
    %c0_61 = arith.constant 0 : index
    %114 = vector.load %arg17[%c0_59, %c0_60, %c0_61] : memref<1x32x32xf32, #tpu.memory_space<vmem>>, vector<1x32x32xf32>
    %115 = vector.shape_cast %114 : vector<1x32x32xf32> to vector<32x32xf32>
    %c0_62 = arith.constant 0 : index
    %c0_63 = arith.constant 0 : index
    %c0_64 = arith.constant 0 : index
    %116 = vector.load %arg18[%c0_62, %c0_63, %c0_64] : memref<1x1x32xf32, #tpu.memory_space<vmem>>, vector<1x1x32xf32>
    %117 = vector.shape_cast %116 : vector<1x1x32xf32> to vector<1x32xf32>
    %c0_65 = arith.constant 0 : index
    %c0_66 = arith.constant 0 : index
    %c0_67 = arith.constant 0 : index
    %118 = vector.load %arg19[%c0_65, %c0_66, %c0_67] : memref<1x1x32xf32, #tpu.memory_space<vmem>>, vector<1x1x32xf32>
    %119 = vector.shape_cast %118 : vector<1x1x32xf32> to vector<1x32xf32>
    %c0_68 = arith.constant 0 : index
    %c0_69 = arith.constant 0 : index
    %c0_70 = arith.constant 0 : index
    %120 = vector.load %arg20[%c0_68, %c0_69, %c0_70] : memref<1x1x32xf32, #tpu.memory_space<vmem>>, vector<1x1x32xf32>
    %121 = vector.shape_cast %120 : vector<1x1x32xf32> to vector<1x32xf32>
    %122 = vector.extract_strided_slice %102 {offsets = [0, 0], sizes = [8, 16], strides = [1, 1]} : vector<8x32xf32> to vector<8x16xf32>
    %123 = vector.extract_strided_slice %102 {offsets = [0, 16], sizes = [8, 16], strides = [1, 1]} : vector<8x32xf32> to vector<8x16xf32>
    %124 = vector.shape_cast %122 : vector<8x16xf32> to vector<1x8x16xf32>
    %125 = vector.shape_cast %123 : vector<8x16xf32> to vector<1x8x16xf32>
    %126 = tpu.concatenate %124, %125 in 0 : vector<1x8x16xf32>, vector<1x8x16xf32> -> vector<2x8x16xf32>
    %127 = vector.extract_strided_slice %110 {offsets = [0, 0], sizes = [8, 16], strides = [1, 1]} : vector<8x32xf32> to vector<8x16xf32>
    %128 = vector.extract_strided_slice %110 {offsets = [0, 16], sizes = [8, 16], strides = [1, 1]} : vector<8x32xf32> to vector<8x16xf32>
    %129 = vector.shape_cast %127 : vector<8x16xf32> to vector<1x8x16xf32>
    %130 = vector.shape_cast %128 : vector<8x16xf32> to vector<1x8x16xf32>
    %131 = tpu.concatenate %129, %130 in 0 : vector<1x8x16xf32>, vector<1x8x16xf32> -> vector<2x8x16xf32>
    %132 = vector.extract_strided_slice %111 {offsets = [0, 0], sizes = [8, 16], strides = [1, 1]} : vector<8x32xf32> to vector<8x16xf32>
    %133 = vector.extract_strided_slice %111 {offsets = [0, 16], sizes = [8, 16], strides = [1, 1]} : vector<8x32xf32> to vector<8x16xf32>
    %134 = vector.shape_cast %132 : vector<8x16xf32> to vector<1x8x16xf32>
    %135 = vector.shape_cast %133 : vector<8x16xf32> to vector<1x8x16xf32>
    %136 = tpu.concatenate %134, %135 in 0 : vector<1x8x16xf32>, vector<1x8x16xf32> -> vector<2x8x16xf32>
    %cst_71 = arith.constant dense<0.000000e+00> : vector<2x8x8xf32>
    %137 = tpu.matmul %126, %131, %cst_71 {dimension_numbers = #tpu.dot_dimension_numbers<[2], [2], [1], [1], [0, 0, 0, 1, 1, 1], [0], [0]>} : vector<2x8x16xf32>, vector<2x8x16xf32>, vector<2x8x8xf32> -> vector<2x8x8xf32>
    %138 = vector.shape_cast %113 : vector<8x8xf32> to vector<1x8x8xf32>
    %cst_72 = arith.constant 0.000000e+00 : f32
    %139 = vector.broadcast %cst_72 : f32 to vector<1x8x8xf32>
    %140 = arith.cmpf ogt, %138, %139 : vector<1x8x8xf32>
    %cst_73 = arith.constant -1.000000e+30 : f32
    %141 = vector.shape_cast %140 : vector<1x8x8xi1> to vector<1x8x8xi1>
    %142 = vector.broadcast %141 : vector<1x8x8xi1> to vector<2x8x8xi1>
    %143 = vector.broadcast %cst_73 : f32 to vector<2x8x8xf32>
    %144 = arith.select %142, %143, %137 : vector<2x8x8xi1>, vector<2x8x8xf32>
    %cst_74 = arith.constant dense<0xFF800000> : vector<2x8xf32>
    %145 = vector.multi_reduction <maximumf>, %144, %cst_74 [2] : vector<2x8x8xf32> to vector<2x8xf32>
    %146 = vector.shape_cast %145 : vector<2x8xf32> to vector<2x8x1xf32>
    %147 = vector.broadcast %146 : vector<2x8x1xf32> to vector<2x8x8xf32>
    %148 = arith.subf %144, %147 : vector<2x8x8xf32>
    %149 = math.exp %148 : vector<2x8x8xf32>
    %cst_75 = arith.constant dense<0.000000e+00> : vector<2x8xf32>
    %150 = vector.multi_reduction <add>, %149, %cst_75 [2] : vector<2x8x8xf32> to vector<2x8xf32>
    %151 = vector.shape_cast %150 : vector<2x8xf32> to vector<2x8x1xf32>
    %152 = tpu.reciprocal %151 {approx = true} : vector<2x8x1xf32> -> vector<2x8x1xf32>
    %153 = vector.broadcast %152 : vector<2x8x1xf32> to vector<2x8x8xf32>
    %154 = arith.mulf %149, %153 : vector<2x8x8xf32>
    %cst_76 = arith.constant dense<0.000000e+00> : vector<2x8x16xf32>
    %155 = tpu.matmul %154, %136, %cst_76 {dimension_numbers = #tpu.dot_dimension_numbers<[2], [1], [1], [2], [0, 0, 0, 1, 1, 2], [0], [0]>} : vector<2x8x8xf32>, vector<2x8x16xf32>, vector<2x8x16xf32> -> vector<2x8x16xf32>
    %156 = vector.extract_strided_slice %155 {offsets = [0, 0, 0], sizes = [1, 8, 16], strides = [1, 1, 1]} : vector<2x8x16xf32> to vector<1x8x16xf32>
    %157 = vector.shape_cast %156 : vector<1x8x16xf32> to vector<8x16xf32>
    %158 = vector.extract_strided_slice %155 {offsets = [1, 0, 0], sizes = [1, 8, 16], strides = [1, 1, 1]} : vector<2x8x16xf32> to vector<1x8x16xf32>
    %159 = vector.shape_cast %158 : vector<1x8x16xf32> to vector<8x16xf32>
    %160 = tpu.concatenate %157, %159 in 1 : vector<8x16xf32>, vector<8x16xf32> -> vector<8x32xf32>
    %cst_77 = arith.constant dense<0.000000e+00> : vector<8x32xf32>
    %161 = tpu.matmul %160, %115, %cst_77 {dimension_numbers = #tpu.dot_dimension_numbers<[1], [0], [0], [1], [0, 0, 1, 1], [], []>} : vector<8x32xf32>, vector<32x32xf32>, vector<8x32xf32> -> vector<8x32xf32>
    %162 = vector.broadcast %117 : vector<1x32xf32> to vector<8x32xf32>
    %163 = arith.addf %161, %162 : vector<8x32xf32>
    %164 = arith.addf %163, %95 : vector<8x32xf32>
    %cst_78 = arith.constant dense<0.000000e+00> : vector<8xf32>
    %165 = vector.multi_reduction <add>, %164, %cst_78 [1] : vector<8x32xf32> to vector<8xf32>
    %166 = vector.shape_cast %165 : vector<8xf32> to vector<8x1xf32>
    %cst_79 = arith.constant 3.200000e+01 : f32
    %167 = vector.broadcast %cst_79 : f32 to vector<8x1xf32>
    %168 = arith.divf %166, %167 : vector<8x1xf32>
    %169 = vector.broadcast %168 : vector<8x1xf32> to vector<8x32xf32>
    %170 = arith.subf %164, %169 : vector<8x32xf32>
    %171 = arith.mulf %170, %170 : vector<8x32xf32>
    %cst_80 = arith.constant dense<0.000000e+00> : vector<8xf32>
    %172 = vector.multi_reduction <add>, %171, %cst_80 [1] : vector<8x32xf32> to vector<8xf32>
    %173 = vector.shape_cast %172 : vector<8xf32> to vector<8x1xf32>
    %cst_81 = arith.constant 3.200000e+01 : f32
    %174 = vector.broadcast %cst_81 : f32 to vector<8x1xf32>
    %175 = arith.divf %173, %174 : vector<8x1xf32>
    %176 = vector.broadcast %168 : vector<8x1xf32> to vector<8x32xf32>
    %177 = arith.subf %164, %176 : vector<8x32xf32>
    %cst_82 = arith.constant 9.99999974E-6 : f32
    %178 = vector.broadcast %cst_82 : f32 to vector<8x1xf32>
    %179 = arith.addf %175, %178 : vector<8x1xf32>
    %180 = math.rsqrt %179 : vector<8x1xf32>
    %181 = vector.broadcast %180 : vector<8x1xf32> to vector<8x32xf32>
    %182 = arith.mulf %177, %181 : vector<8x32xf32>
    %183 = vector.broadcast %119 : vector<1x32xf32> to vector<8x32xf32>
    %184 = arith.mulf %182, %183 : vector<8x32xf32>
    %185 = vector.broadcast %121 : vector<1x32xf32> to vector<8x32xf32>
    %186 = arith.addf %184, %185 : vector<8x32xf32>
    %187 = vector.broadcast %8 : vector<8x1xf32> to vector<8x32xf32>
    %188 = arith.mulf %186, %187 : vector<8x32xf32>
    %c0_83 = arith.constant 0 : index
    %c0_84 = arith.constant 0 : index
    %c0_85 = arith.constant 0 : index
    %189 = vector.load %arg21[%c0_83, %c0_84, %c0_85] : memref<1x32x64xf32, #tpu.memory_space<vmem>>, vector<1x32x64xf32>
    %190 = vector.shape_cast %189 : vector<1x32x64xf32> to vector<32x64xf32>
    %cst_86 = arith.constant dense<0.000000e+00> : vector<8x64xf32>
    %191 = tpu.matmul %188, %190, %cst_86 {dimension_numbers = #tpu.dot_dimension_numbers<[1], [0], [0], [1], [0, 0, 1, 1], [], []>} : vector<8x32xf32>, vector<32x64xf32>, vector<8x64xf32> -> vector<8x64xf32>
    %c0_87 = arith.constant 0 : index
    %c0_88 = arith.constant 0 : index
    %c0_89 = arith.constant 0 : index
    %192 = vector.load %arg22[%c0_87, %c0_88, %c0_89] : memref<1x1x64xf32, #tpu.memory_space<vmem>>, vector<1x1x64xf32>
    %193 = vector.shape_cast %192 : vector<1x1x64xf32> to vector<1x64xf32>
    %194 = vector.broadcast %193 : vector<1x64xf32> to vector<8x64xf32>
    %195 = arith.addf %191, %194 : vector<8x64xf32>
    %cst_90 = arith.constant 0.000000e+00 : f32
    %196 = vector.broadcast %cst_90 : f32 to vector<8x64xf32>
    %197 = arith.maximumf %195, %196 : vector<8x64xf32>
    %c0_91 = arith.constant 0 : index
    %c0_92 = arith.constant 0 : index
    %c0_93 = arith.constant 0 : index
    %198 = vector.load %arg23[%c0_91, %c0_92, %c0_93] : memref<1x64x32xf32, #tpu.memory_space<vmem>>, vector<1x64x32xf32>
    %199 = vector.shape_cast %198 : vector<1x64x32xf32> to vector<64x32xf32>
    %cst_94 = arith.constant dense<0.000000e+00> : vector<8x32xf32>
    %200 = tpu.matmul %197, %199, %cst_94 {dimension_numbers = #tpu.dot_dimension_numbers<[1], [0], [0], [1], [0, 0, 1, 1], [], []>} : vector<8x64xf32>, vector<64x32xf32>, vector<8x32xf32> -> vector<8x32xf32>
    %c0_95 = arith.constant 0 : index
    %c0_96 = arith.constant 0 : index
    %c0_97 = arith.constant 0 : index
    %201 = vector.load %arg24[%c0_95, %c0_96, %c0_97] : memref<1x1x32xf32, #tpu.memory_space<vmem>>, vector<1x1x32xf32>
    %202 = vector.shape_cast %201 : vector<1x1x32xf32> to vector<1x32xf32>
    %203 = vector.broadcast %202 : vector<1x32xf32> to vector<8x32xf32>
    %204 = arith.addf %200, %203 : vector<8x32xf32>
    %205 = arith.addf %204, %188 : vector<8x32xf32>
    %c0_98 = arith.constant 0 : index
    %c0_99 = arith.constant 0 : index
    %c0_100 = arith.constant 0 : index
    %206 = vector.load %arg25[%c0_98, %c0_99, %c0_100] : memref<1x1x32xf32, #tpu.memory_space<vmem>>, vector<1x1x32xf32>
    %207 = vector.shape_cast %206 : vector<1x1x32xf32> to vector<1x32xf32>
    %c0_101 = arith.constant 0 : index
    %c0_102 = arith.constant 0 : index
    %c0_103 = arith.constant 0 : index
    %208 = vector.load %arg26[%c0_101, %c0_102, %c0_103] : memref<1x1x32xf32, #tpu.memory_space<vmem>>, vector<1x1x32xf32>
    %209 = vector.shape_cast %208 : vector<1x1x32xf32> to vector<1x32xf32>
    %cst_104 = arith.constant dense<0.000000e+00> : vector<8xf32>
    %210 = vector.multi_reduction <add>, %205, %cst_104 [1] : vector<8x32xf32> to vector<8xf32>
    %211 = vector.shape_cast %210 : vector<8xf32> to vector<8x1xf32>
    %cst_105 = arith.constant 3.200000e+01 : f32
    %212 = vector.broadcast %cst_105 : f32 to vector<8x1xf32>
    %213 = arith.divf %211, %212 : vector<8x1xf32>
    %214 = vector.broadcast %213 : vector<8x1xf32> to vector<8x32xf32>
    %215 = arith.subf %205, %214 : vector<8x32xf32>
    %216 = arith.mulf %215, %215 : vector<8x32xf32>
    %cst_106 = arith.constant dense<0.000000e+00> : vector<8xf32>
    %217 = vector.multi_reduction <add>, %216, %cst_106 [1] : vector<8x32xf32> to vector<8xf32>
    %218 = vector.shape_cast %217 : vector<8xf32> to vector<8x1xf32>
    %cst_107 = arith.constant 3.200000e+01 : f32
    %219 = vector.broadcast %cst_107 : f32 to vector<8x1xf32>
    %220 = arith.divf %218, %219 : vector<8x1xf32>
    %221 = vector.broadcast %213 : vector<8x1xf32> to vector<8x32xf32>
    %222 = arith.subf %205, %221 : vector<8x32xf32>
    %cst_108 = arith.constant 9.99999974E-6 : f32
    %223 = vector.broadcast %cst_108 : f32 to vector<8x1xf32>
    %224 = arith.addf %220, %223 : vector<8x1xf32>
    %225 = math.rsqrt %224 : vector<8x1xf32>
    %226 = vector.broadcast %225 : vector<8x1xf32> to vector<8x32xf32>
    %227 = arith.mulf %222, %226 : vector<8x32xf32>
    %228 = vector.broadcast %207 : vector<1x32xf32> to vector<8x32xf32>
    %229 = arith.mulf %227, %228 : vector<8x32xf32>
    %230 = vector.broadcast %209 : vector<1x32xf32> to vector<8x32xf32>
    %231 = arith.addf %229, %230 : vector<8x32xf32>
    %232 = vector.broadcast %8 : vector<8x1xf32> to vector<8x32xf32>
    %233 = arith.mulf %231, %232 : vector<8x32xf32>
    %c0_109 = arith.constant 0 : index
    %c0_110 = arith.constant 0 : index
    %c0_111 = arith.constant 0 : index
    %234 = vector.load %arg27[%c0_109, %c0_110, %c0_111] : memref<1x8x32xf32, #tpu.memory_space<vmem>>, vector<1x8x32xf32>
    %235 = vector.shape_cast %234 : vector<1x8x32xf32> to vector<8x32xf32>
    %236 = vector.shape_cast %233 : vector<8x32xf32> to vector<1x8x32xf32>
    tpu.vector_store %arg27[%c0_109, %c0_110, %c0_111], %236 {strides = array<i32>} : memref<1x8x32xf32, #tpu.memory_space<vmem>>, vector<1x8x32xf32>,
    return
  }
  func.func @transform_0(%arg0: i32, %arg1: i32) -> (i32, i32, i32) {
    %c0_i32 = arith.constant 0 : i32
    %c0_i32_0 = arith.constant 0 : i32
    %c0_i32_1 = arith.constant 0 : i32
    return %arg0, %c0_i32, %c0_i32_0 : i32, i32, i32
  }
  func.func @transform_1(%arg0: i32, %arg1: i32) -> (i32, i32, i32) {
    %c0_i32 = arith.constant 0 : i32
    %c0_i32_0 = arith.constant 0 : i32
    %c0_i32_1 = arith.constant 0 : i32
    return %arg0, %c0_i32, %c0_i32_0 : i32, i32, i32
  }
  func.func @transform_2(%arg0: i32, %arg1: i32) -> (i32, i32, i32) {
    %c0_i32 = arith.constant 0 : i32
    %c0_i32_0 = arith.constant 0 : i32
    %c0_i32_1 = arith.constant 0 : i32
    return %arg0, %c0_i32, %c0_i32_0 : i32, i32, i32
  }
  func.func @transform_3(%arg0: i32, %arg1: i32) -> (i32, i32, i32) {
    %c0_i32 = arith.constant 0 : i32
    %c0_i32_0 = arith.constant 0 : i32
    %c0_i32_1 = arith.constant 0 : i32
    return %arg0, %c0_i32, %c0_i32_0 : i32, i32, i32
  }
  func.func @transform_4(%arg0: i32, %arg1: i32) -> (i32, i32, i32) {
    %c0_i32 = arith.constant 0 : i32
    %c0_i32_0 = arith.constant 0 : i32
    %c0_i32_1 = arith.constant 0 : i32
    return %arg0, %c0_i32, %c0_i32_0 : i32, i32, i32
  }
  func.func @transform_5(%arg0: i32, %arg1: i32) -> (i32, i32, i32) {
    %c0_i32 = arith.constant 0 : i32
    %c0_i32_0 = arith.constant 0 : i32
    %c0_i32_1 = arith.constant 0 : i32
    return %arg1, %c0_i32, %c0_i32_0 : i32, i32, i32
  }
  func.func @transform_6(%arg0: i32, %arg1: i32) -> (i32, i32, i32) {
    %c0_i32 = arith.constant 0 : i32
    %c0_i32_0 = arith.constant 0 : i32
    %c0_i32_1 = arith.constant 0 : i32
    return %arg1, %c0_i32, %c0_i32_0 : i32, i32, i32
  }
  func.func @transform_7(%arg0: i32, %arg1: i32) -> (i32, i32, i32) {
    %c0_i32 = arith.constant 0 : i32
    %c0_i32_0 = arith.constant 0 : i32
    %c0_i32_1 = arith.constant 0 : i32
    return %arg1, %c0_i32, %c0_i32_0 : i32, i32, i32
  }
  func.func @transform_8(%arg0: i32, %arg1: i32) -> (i32, i32, i32) {
    %c0_i32 = arith.constant 0 : i32
    %c0_i32_0 = arith.constant 0 : i32
    %c0_i32_1 = arith.constant 0 : i32
    return %arg1, %c0_i32, %c0_i32_0 : i32, i32, i32
  }
  func.func @transform_9(%arg0: i32, %arg1: i32) -> (i32, i32, i32) {
    %c0_i32 = arith.constant 0 : i32
    %c0_i32_0 = arith.constant 0 : i32
    %c0_i32_1 = arith.constant 0 : i32
    return %arg1, %c0_i32, %c0_i32_0 : i32, i32, i32
  }
  func.func @transform_10(%arg0: i32, %arg1: i32) -> (i32, i32, i32) {
    %c0_i32 = arith.constant 0 : i32
    %c0_i32_0 = arith.constant 0 : i32
    %c0_i32_1 = arith.constant 0 : i32
    return %arg1, %c0_i32, %c0_i32_0 : i32, i32, i32
  }
  func.func @transform_11(%arg0: i32, %arg1: i32) -> (i32, i32, i32) {
    %c0_i32 = arith.constant 0 : i32
    %c0_i32_0 = arith.constant 0 : i32
    %c0_i32_1 = arith.constant 0 : i32
    return %arg1, %c0_i32, %c0_i32_0 : i32, i32, i32
  }
  func.func @transform_12(%arg0: i32, %arg1: i32) -> (i32, i32, i32) {
    %c0_i32 = arith.constant 0 : i32
    %c0_i32_0 = arith.constant 0 : i32
    %c0_i32_1 = arith.constant 0 : i32
    return %arg1, %c0_i32, %c0_i32_0 : i32, i32, i32
  }
  func.func @transform_13(%arg0: i32, %arg1: i32) -> (i32, i32, i32) {
    %c0_i32 = arith.constant 0 : i32
    %c0_i32_0 = arith.constant 0 : i32
    %c0_i32_1 = arith.constant 0 : i32
    return %arg1, %c0_i32, %c0_i32_0 : i32, i32, i32
  }
  func.func @transform_14(%arg0: i32, %arg1: i32) -> (i32, i32, i32) {
    %c0_i32 = arith.constant 0 : i32
    %c0_i32_0 = arith.constant 0 : i32
    %c0_i32_1 = arith.constant 0 : i32
    return %arg1, %c0_i32, %c0_i32_0 : i32, i32, i32
  }
  func.func @transform_15(%arg0: i32, %arg1: i32) -> (i32, i32, i32) {
    %c0_i32 = arith.constant 0 : i32
    %c0_i32_0 = arith.constant 0 : i32
    %c0_i32_1 = arith.constant 0 : i32
    return %arg1, %c0_i32, %c0_i32_0 : i32, i32, i32
  }
  func.func @transform_16(%arg0: i32, %arg1: i32) -> (i32, i32, i32) {
    %c0_i32 = arith.constant 0 : i32
    %c0_i32_0 = arith.constant 0 : i32
    %c0_i32_1 = arith.constant 0 : i32
    return %arg1, %c0_i32, %c0_i32_0 : i32, i32, i32
  }
  func.func @transform_17(%arg0: i32, %arg1: i32) -> (i32, i32, i32) {
    %c0_i32 = arith.constant 0 : i32
    %c0_i32_0 = arith.constant 0 : i32
    %c0_i32_1 = arith.constant 0 : i32
    return %arg1, %c0_i32, %c0_i32_0 : i32, i32, i32
  }
  func.func @transform_18(%arg0: i32, %arg1: i32) -> (i32, i32, i32) {
    %c0_i32 = arith.constant 0 : i32
    %c0_i32_0 = arith.constant 0 : i32
    %c0_i32_1 = arith.constant 0 : i32
    return %arg1, %c0_i32, %c0_i32_0 : i32, i32, i32
  }
  func.func @transform_19(%arg0: i32, %arg1: i32) -> (i32, i32, i32) {
    %c0_i32 = arith.constant 0 : i32
    %c0_i32_0 = arith.constant 0 : i32
    %c0_i32_1 = arith.constant 0 : i32
    return %arg1, %c0_i32, %c0_i32_0 : i32, i32, i32
  }
  func.func @transform_20(%arg0: i32, %arg1: i32) -> (i32, i32, i32) {
    %c0_i32 = arith.constant 0 : i32
    %c0_i32_0 = arith.constant 0 : i32
    %c0_i32_1 = arith.constant 0 : i32
    return %arg1, %c0_i32, %c0_i32_0 : i32, i32, i32
  }
  func.func @transform_21(%arg0: i32, %arg1: i32) -> (i32, i32, i32) {
    %c0_i32 = arith.constant 0 : i32
    %c0_i32_0 = arith.constant 0 : i32
    %c0_i32_1 = arith.constant 0 : i32
    return %arg1, %c0_i32, %c0_i32_0 : i32, i32, i32
  }
  func.func @transform_22(%arg0: i32, %arg1: i32) -> (i32, i32, i32) {
    %c0_i32 = arith.constant 0 : i32
    %c0_i32_0 = arith.constant 0 : i32
    %c0_i32_1 = arith.constant 0 : i32
    return %arg1, %c0_i32, %c0_i32_0 : i32, i32, i32
  }
  func.func @transform_23(%arg0: i32, %arg1: i32) -> (i32, i32, i32) {
    %c0_i32 = arith.constant 0 : i32
    %c0_i32_0 = arith.constant 0 : i32
    %c0_i32_1 = arith.constant 0 : i32
    return %arg1, %c0_i32, %c0_i32_0 : i32, i32, i32
  }
  func.func @transform_24(%arg0: i32, %arg1: i32) -> (i32, i32, i32) {
    %c0_i32 = arith.constant 0 : i32
    %c0_i32_0 = arith.constant 0 : i32
    %c0_i32_1 = arith.constant 0 : i32
    return %arg1, %c0_i32, %c0_i32_0 : i32, i32, i32
  }
  func.func @transform_25(%arg0: i32, %arg1: i32) -> (i32, i32, i32) {
    %c0_i32 = arith.constant 0 : i32
    %c0_i32_0 = arith.constant 0 : i32
    %c0_i32_1 = arith.constant 0 : i32
    return %arg0, %c0_i32, %c0_i32_0 : i32, i32, i32
  }
}

</mosaic_0001>

<llo_original>
// kernel: tpu_custom_call.1
$region0: #{tpu_custom_call.1}
  #allocation0 [shape = 'u32[]', space=smem, size = 0x4, offset = 0x4, fixed_abs, tag = 'smem constant byte address 0x4 - core index']
  #allocation1 [shape = 'u32[72,128]{1,0:T(1,128)}', space=vmem, size = 0x9000, scoped, tag = 'internal scratch']
  %s0 = inlined_call_operand.vmem [shape: f32[2,8,32], index: 0, kind: input, shape index: {}]
  %s1 = inlined_call_operand.hbm [shape: f32[2,8,32], index: 1, kind: input, shape index: {}]
  %s2 = inlined_call_operand.vmem [shape: f32[2,8,1], index: 2, kind: input, shape index: {}]
  %s3 = inlined_call_operand.hbm [shape: f32[2,8,8], index: 3, kind: input, shape index: {}]
  %s4 = inlined_call_operand.hbm [shape: f32[2,8,8], index: 4, kind: input, shape index: {}]
  %s5 = inlined_call_operand.vmem [shape: f32[2,32,96], index: 5, kind: input, shape index: {}]
  %s6 = inlined_call_operand.vmem [shape: f32[2,1,96], index: 6, kind: input, shape index: {}]
  %s7 = inlined_call_operand.vmem [shape: f32[2,32,32], index: 7, kind: input, shape index: {}]
  %s8 = inlined_call_operand.vmem [shape: f32[2,1,32], index: 8, kind: input, shape index: {}]
  %s9 = inlined_call_operand.vmem [shape: f32[2,1,32], index: 9, kind: input, shape index: {}]
  %s10 = inlined_call_operand.vmem [shape: f32[2,1,32], index: 10, kind: input, shape index: {}]
  %s11 = inlined_call_operand.vmem [shape: f32[2,32,32], index: 11, kind: input, shape index: {}]
  %s12 = inlined_call_operand.vmem [shape: f32[2,1,32], index: 12, kind: input, shape index: {}]
  %s13 = inlined_call_operand.hbm [shape: f32[2,32,64], index: 13, kind: input, shape index: {}]
  %s14 = inlined_call_operand.vmem [shape: f32[2,1,64], index: 14, kind: input, shape index: {}]
  %s15 = inlined_call_operand.hbm [shape: f32[2,32,32], index: 15, kind: input, shape index: {}]
  %s16 = inlined_call_operand.vmem [shape: f32[2,1,32], index: 16, kind: input, shape index: {}]
  %s17 = inlined_call_operand.vmem [shape: f32[2,1,32], index: 17, kind: input, shape index: {}]
  %s18 = inlined_call_operand.vmem [shape: f32[2,1,32], index: 18, kind: input, shape index: {}]
  %s19 = inlined_call_operand.hbm [shape: f32[2,32,64], index: 19, kind: input, shape index: {}]
  %s20 = inlined_call_operand.hbm [shape: f32[2,1,64], index: 20, kind: input, shape index: {}]
  %s21 = inlined_call_operand.vmem [shape: f32[2,64,32], index: 21, kind: input, shape index: {}]
  %s22 = inlined_call_operand.vmem [shape: f32[2,1,32], index: 22, kind: input, shape index: {}]
  %s23 = inlined_call_operand.vmem [shape: f32[2,1,32], index: 23, kind: input, shape index: {}]
  %s24 = inlined_call_operand.vmem [shape: f32[2,1,32], index: 24, kind: input, shape index: {}]
  %s25 = inlined_call_operand.hbm [shape: f32[2,8,32], index: 25, kind: output, shape index: {}]
  %s26 = sld [smem:[#allocation0]]
  $region165: #{tpu_custom_call.1} parent=0
    _
  %s28 = ssub.s32 1, %s26
  %s29 = scalar_select 0, %s28, %s26
  $region1: #{tpu_custom_call.1} parent=0
    #allocation2 [shape = 'u8[8192]{0}', space=vmem, size = 0x2000, scoped, tag = 'input window, operand 1']
    #allocation3 [shape = 's32[2]{0}', space=sflag, size = 0x8, scoped, tag = 'scoped memory for tpu_custom_call.1']
    #allocation4 [shape = 's32[2]{0}', space=sflag, size = 0x8, scoped, tag = 'scoped memory for tpu_custom_call.1']
    #allocation5 [shape = 'u8[8192]{0}', space=vmem, size = 0x2000, scoped, tag = 'input window, operand 3']
    #allocation6 [shape = 's32[2]{0}', space=sflag, size = 0x8, scoped, tag = 'scoped memory for tpu_custom_call.1']
    #allocation7 [shape = 'u8[8192]{0}', space=vmem, size = 0x2000, scoped, tag = 'input window, operand 4']
    #allocation8 [shape = 'u8[32768]{0}', space=vmem, size = 0x8000, scoped, tag = 'input window, operand 13']
    #allocation9 [shape = 's32[2]{0}', space=sflag, size = 0x8, scoped, tag = 'scoped memory for tpu_custom_call.1']
    #allocation10 [shape = 'u8[32768]{0}', space=vmem, size = 0x8000, scoped, tag = 'input window, operand 15']
    #allocation11 [shape = 'u8[32768]{0}', space=vmem, size = 0x8000, scoped, tag = 'input window, operand 19']
    #allocation12 [shape = 's32[2]{0}', space=sflag, size = 0x8, scoped, tag = 'scoped memory for tpu_custom_call.1']
    #allocation13 [shape = 'u8[1024]{0}', space=vmem, size = 0x400, scoped, tag = 'input window, operand 20']
    #allocation14 [shape = 'u8[8192]{0}', space=vmem, size = 0x2000, scoped, tag = 'output window, operand 0']
    %30 = vsyncpa [#allocation3], 0
    %s31 = scalar_lea.sflag [#allocation3], 1
    %32 = vsyncpa %s31, 0
    %33 = vsyncpa [#allocation6], 0
    %s34 = scalar_lea.sflag [#allocation6], 1
    %35 = vsyncpa %s34, 0
    %36 = vsyncpa [#allocation9], 0
    %s37 = scalar_lea.sflag [#allocation9], 1
    %38 = vsyncpa %s37, 0
    %39 = vsyncpa [#allocation12], 0
    %s40 = scalar_lea.sflag [#allocation12], 1
    %41 = vsyncpa %s40, 0
    %42 = vsyncpa [#allocation4], 0
    %s43 = scalar_lea.sflag [#allocation4], 1
    %44 = vsyncpa %s43, 0
    loop: start=0, step=1, limit=6
    $region2: #{tpu_custom_call.1} parent=1 // loop_pre_header
      _
    $region3: #{tpu_custom_call.1} parent=1 // loop_header
      %s46 = sphi 0, %s50
      %p47 = scmp.ge.s32.totalorder %s46, 6
      %s53 = sphi 0, %s65
      %s54 = sphi 0, %s61
      %s55 = sphi 0, %s53
      %s56 = sphi 0, %s54
      %s57 = sphi 0, %s55
      %s58 = sphi 0, %s56
      %s68 = sphi 0, %s70
      %s71 = sphi 0, %s68
      %s72 = sphi 0, %s71
      %s88 = sphi 0, %s72
      %s94 = sphi 0, %s96
      %s97 = sphi 0, %s94
      %s98 = sphi 0, %s97
      %s114 = sphi 0, %s98
      %s120 = sphi 0, %s122
      %s123 = sphi 0, %s120
      %s124 = sphi 0, %s123
      %s140 = sphi 0, %s124
      %s146 = sphi 0, %s148
      %s149 = sphi 0, %s146
      %s150 = sphi 0, %s149
      %s166 = sphi 0, %s150
      %s172 = sphi 0, %s174
      %s175 = sphi 0, %s172
      %s176 = sphi 0, %s175
      %s192 = sphi 0, %s176
      %s198 = sphi 0, %s200
      %s201 = sphi 0, %s198
      %s202 = sphi 0, %s201
      %s218 = sphi 0, %s202
      %s224 = sphi 0, %s226
      %s227 = sphi 0, %s224
      %s228 = sphi 0, %s227
      %s244 = sphi 0, %s228
      %s250 = sphi 0, %s252
      %s253 = sphi 0, %s250
      %s254 = sphi 0, %s253
      %s270 = sphi 0, %s254
      %s276 = sphi 0, %s278
      %s279 = sphi 0, %s276
      %s280 = sphi 0, %s279
      %s296 = sphi 0, %s280
      %s302 = sphi 0, %s304
      %s305 = sphi 0, %s302
      %s306 = sphi 0, %s305
      %s322 = sphi 0, %s306
      %s328 = sphi 0, %s330
      %s331 = sphi 0, %s328
      %s332 = sphi 0, %s331
      %s348 = sphi 0, %s332
      %s354 = sphi 0, %s356
      %s357 = sphi 0, %s354
      %s358 = sphi 0, %s357
      %s374 = sphi 0, %s358
      %s380 = sphi 0, %s382
      %s383 = sphi 0, %s380
      %s384 = sphi 0, %s383
      %s400 = sphi 0, %s384
      %s406 = sphi 0, %s408
      %s409 = sphi 0, %s406
      %s410 = sphi 0, %s409
      %s426 = sphi 0, %s410
      %s432 = sphi 0, %s434
      %s435 = sphi 0, %s432
      %s436 = sphi 0, %s435
      %s452 = sphi 0, %s436
      %s458 = sphi 0, %s460
      %s461 = sphi 0, %s458
      %s462 = sphi 0, %s461
      %s478 = sphi 0, %s462
      %s484 = sphi 0, %s486
      %s487 = sphi 0, %s484
      %s488 = sphi 0, %s487
      %s504 = sphi 0, %s488
      %s510 = sphi 0, %s512
      %s513 = sphi 0, %s510
      %s514 = sphi 0, %s513
      %s530 = sphi 0, %s514
      %s536 = sphi 0, %s538
      %s539 = sphi 0, %s536
      %s540 = sphi 0, %s539
      %s556 = sphi 0, %s540
      %s562 = sphi 0, %s564
      %s565 = sphi 0, %s562
      %s566 = sphi 0, %s565
      %s582 = sphi 0, %s566
      %s588 = sphi 0, %s590
      %s591 = sphi 0, %s588
      %s592 = sphi 0, %s591
      %s608 = sphi 0, %s592
      %s614 = sphi 0, %s616
      %s617 = sphi 0, %s614
      %s618 = sphi 0, %s617
      %s634 = sphi 0, %s618
      %s640 = sphi 0, %s642
      %s643 = sphi 0, %s640
      %s644 = sphi 0, %s643
      %s660 = sphi 0, %s644
      %s666 = sphi 0, %s668
      %s669 = sphi 0, %s666
      %s670 = sphi 0, %s669
      %s686 = sphi 0, %s670
      %s692 = sphi 0, %s694
      %s695 = sphi 0, %s692
      %s696 = sphi 0, %s695
      %s712 = sphi 0, %s696
      %s718 = sphi 0, %s720
      %s721 = sphi 0, %s718
      %s722 = sphi 0, %s721
      %s738 = sphi 0, %s722
    $region4: #{tpu_custom_call.1} parent=1 // loop_header_branch
      %49 = sbr.rel (%p47) target = $region8
    $region5: #{tpu_custom_call.1} parent=1 // loop_body
      %s51 = ssub.s32 %s46, 1
      %s52 = ssub.s32 %s46, 2
      %s59 = sadd.s32 1, %s54
      %p60 = scmp.ge.s32.totalorder %s59, 2
      %s61 = scalar_select %p60, 0, %s59
      %s62 = sadd.s32 1, %s53
      %s63 = scalar_select %p60, %s62, %s53
      %p64 = scmp.ge.s32.totalorder %s63, 2
      %s65 = scalar_select %p64, 0, %s63
      %s66 = ssub.s32 %s53, %s65
      %p67 = scmp.eq.s32.totalorder %s66, 0
      %s69 = sadd.s32 %s68, 1
      %s70 = scalar_select %p67, %s68, %s69
      %p73 = pneg %p67
      %p74 = scmp.eq.s32.totalorder %s46, 3
      %p75 = por %p73, %p74
      %p76 = scmp.ne.s32.totalorder %s68, %s71
      %p77 = scmp.eq.s32.totalorder %s46, 0
      %p78 = por %p76, %p77
      %p79 = scmp.ne.s32.totalorder %s68, %s71
      %p80 = scmp.eq.s32.totalorder %s51, 3
      %p81 = por %p79, %p80
      %p82 = scmp.ne.s32.totalorder %s71, %s72
      %p83 = scmp.eq.s32.totalorder %s51, 0
      %p84 = por %p82, %p83
      %p85 = scmp.ne.s32.totalorder %s71, %s72
      %p86 = scmp.eq.s32.totalorder %s52, 3
      %p87 = por %p85, %p86
      %p89 = scmp.ne.s32.totalorder %s72, %s88
      %p90 = scmp.eq.s32.totalorder %s52, 0
      %p91 = por %p89, %p90
      %s92 = ssub.s32 %s53, %s65
      %p93 = scmp.eq.s32.totalorder %s92, 0
      %s95 = sadd.s32 %s94, 1
      %s96 = scalar_select %p93, %s94, %s95
      %p99 = pneg %p93
      %p100 = scmp.eq.s32.totalorder %s46, 3
      %p101 = por %p99, %p100
      %p102 = scmp.ne.s32.totalorder %s94, %s97
      %p103 = scmp.eq.s32.totalorder %s46, 0
      %p104 = por %p102, %p103
      %p105 = scmp.ne.s32.totalorder %s94, %s97
      %p106 = scmp.eq.s32.totalorder %s51, 3
      %p107 = por %p105, %p106
      %p108 = scmp.ne.s32.totalorder %s97, %s98
      %p109 = scmp.eq.s32.totalorder %s51, 0
      %p110 = por %p108, %p109
      %p111 = scmp.ne.s32.totalorder %s97, %s98
      %p112 = scmp.eq.s32.totalorder %s52, 3
      %p113 = por %p111, %p112
      %p115 = scmp.ne.s32.totalorder %s98, %s114
      %p116 = scmp.eq.s32.totalorder %s52, 0
      %p117 = por %p115, %p116
      %s118 = ssub.s32 %s53, %s65
      %p119 = scmp.eq.s32.totalorder %s118, 0
      %s121 = sadd.s32 %s120, 1
      %s122 = scalar_select %p119, %s120, %s121
      %p125 = pneg %p119
      %p126 = scmp.eq.s32.totalorder %s46, 3
      %p127 = por %p125, %p126
      %p128 = scmp.ne.s32.totalorder %s120, %s123
      %p129 = scmp.eq.s32.totalorder %s46, 0
      %p130 = por %p128, %p129
      %p131 = scmp.ne.s32.totalorder %s120, %s123
      %p132 = scmp.eq.s32.totalorder %s51, 3
      %p133 = por %p131, %p132
      %p134 = scmp.ne.s32.totalorder %s123, %s124
      %p135 = scmp.eq.s32.totalorder %s51, 0
      %p136 = por %p134, %p135
      %p137 = scmp.ne.s32.totalorder %s123, %s124
      %p138 = scmp.eq.s32.totalorder %s52, 3
      %p139 = por %p137, %p138
      %p141 = scmp.ne.s32.totalorder %s124, %s140
      %p142 = scmp.eq.s32.totalorder %s52, 0
      %p143 = por %p141, %p142
      %s144 = ssub.s32 %s53, %s65
      %p145 = scmp.eq.s32.totalorder %s144, 0
      %s147 = sadd.s32 %s146, 1
      %s148 = scalar_select %p145, %s146, %s147
      %p151 = pneg %p145
      %p152 = scmp.eq.s32.totalorder %s46, 3
      %p153 = por %p151, %p152
      %p154 = scmp.ne.s32.totalorder %s146, %s149
      %p155 = scmp.eq.s32.totalorder %s46, 0
      %p156 = por %p154, %p155
      %p157 = scmp.ne.s32.totalorder %s146, %s149
      %p158 = scmp.eq.s32.totalorder %s51, 3
      %p159 = por %p157, %p158
      %p160 = scmp.ne.s32.totalorder %s149, %s150
      %p161 = scmp.eq.s32.totalorder %s51, 0
      %p162 = por %p160, %p161
      %p163 = scmp.ne.s32.totalorder %s149, %s150
      %p164 = scmp.eq.s32.totalorder %s52, 3
      %p165 = por %p163, %p164
      %p167 = scmp.ne.s32.totalorder %s150, %s166
      %p168 = scmp.eq.s32.totalorder %s52, 0
      %p169 = por %p167, %p168
      %s170 = ssub.s32 %s53, %s65
      %p171 = scmp.eq.s32.totalorder %s170, 0
      %s173 = sadd.s32 %s172, 1
      %s174 = scalar_select %p171, %s172, %s173
      %p177 = pneg %p171
      %p178 = scmp.eq.s32.totalorder %s46, 3
      %p179 = por %p177, %p178
      %p180 = scmp.ne.s32.totalorder %s172, %s175
      %p181 = scmp.eq.s32.totalorder %s46, 0
      %p182 = por %p180, %p181
      %p183 = scmp.ne.s32.totalorder %s172, %s175
      %p184 = scmp.eq.s32.totalorder %s51, 3
      %p185 = por %p183, %p184
      %p186 = scmp.ne.s32.totalorder %s175, %s176
      %p187 = scmp.eq.s32.totalorder %s51, 0
      %p188 = por %p186, %p187
      %p189 = scmp.ne.s32.totalorder %s175, %s176
      %p190 = scmp.eq.s32.totalorder %s52, 3
      %p191 = por %p189, %p190
      %p193 = scmp.ne.s32.totalorder %s176, %s192
      %p194 = scmp.eq.s32.totalorder %s52, 0
      %p195 = por %p193, %p194
      %s196 = ssub.s32 %s54, %s61
      %p197 = scmp.eq.s32.totalorder %s196, 0
      %s199 = sadd.s32 %s198, 1
      %s200 = scalar_select %p197, %s198, %s199
      %p203 = pneg %p197
      %p204 = scmp.eq.s32.totalorder %s46, 3
      %p205 = por %p203, %p204
      %p206 = scmp.ne.s32.totalorder %s198, %s201
      %p207 = scmp.eq.s32.totalorder %s46, 0
      %p208 = por %p206, %p207
      %p209 = scmp.ne.s32.totalorder %s198, %s201
      %p210 = scmp.eq.s32.totalorder %s51, 3
      %p211 = por %p209, %p210
      %p212 = scmp.ne.s32.totalorder %s201, %s202
      %p213 = scmp.eq.s32.totalorder %s51, 0
      %p214 = por %p212, %p213
      %p215 = scmp.ne.s32.totalorder %s201, %s202
      %p216 = scmp.eq.s32.totalorder %s52, 3
      %p217 = por %p215, %p216
      %p219 = scmp.ne.s32.totalorder %s202, %s218
      %p220 = scmp.eq.s32.totalorder %s52, 0
      %p221 = por %p219, %p220
      %s222 = ssub.s32 %s54, %s61
      %p223 = scmp.eq.s32.totalorder %s222, 0
      %s225 = sadd.s32 %s224, 1
      %s226 = scalar_select %p223, %s224, %s225
      %p229 = pneg %p223
      %p230 = scmp.eq.s32.totalorder %s46, 3
      %p231 = por %p229, %p230
      %p232 = scmp.ne.s32.totalorder %s224, %s227
      %p233 = scmp.eq.s32.totalorder %s46, 0
      %p234 = por %p232, %p233
      %p235 = scmp.ne.s32.totalorder %s224, %s227
      %p236 = scmp.eq.s32.totalorder %s51, 3
      %p237 = por %p235, %p236
      %p238 = scmp.ne.s32.totalorder %s227, %s228
      %p239 = scmp.eq.s32.totalorder %s51, 0
      %p240 = por %p238, %p239
      %p241 = scmp.ne.s32.totalorder %s227, %s228
      %p242 = scmp.eq.s32.totalorder %s52, 3
      %p243 = por %p241, %p242
      %p245 = scmp.ne.s32.totalorder %s228, %s244
      %p246 = scmp.eq.s32.totalorder %s52, 0
      %p247 = por %p245, %p246
      %s248 = ssub.s32 %s54, %s61
      %p249 = scmp.eq.s32.totalorder %s248, 0
      %s251 = sadd.s32 %s250, 1
      %s252 = scalar_select %p249, %s250, %s251
      %p255 = pneg %p249
      %p256 = scmp.eq.s32.totalorder %s46, 3
      %p257 = por %p255, %p256
      %p258 = scmp.ne.s32.totalorder %s250, %s253
      %p259 = scmp.eq.s32.totalorder %s46, 0
      %p260 = por %p258, %p259
      %p261 = scmp.ne.s32.totalorder %s250, %s253
      %p262 = scmp.eq.s32.totalorder %s51, 3
      %p263 = por %p261, %p262
      %p264 = scmp.ne.s32.totalorder %s253, %s254
      %p265 = scmp.eq.s32.totalorder %s51, 0
      %p266 = por %p264, %p265
      %p267 = scmp.ne.s32.totalorder %s253, %s254
      %p268 = scmp.eq.s32.totalorder %s52, 3
      %p269 = por %p267, %p268
      %p271 = scmp.ne.s32.totalorder %s254, %s270
      %p272 = scmp.eq.s32.totalorder %s52, 0
      %p273 = por %p271, %p272
      %s274 = ssub.s32 %s54, %s61
      %p275 = scmp.eq.s32.totalorder %s274, 0
      %s277 = sadd.s32 %s276, 1
      %s278 = scalar_select %p275, %s276, %s277
      %p281 = pneg %p275
      %p282 = scmp.eq.s32.totalorder %s46, 3
      %p283 = por %p281, %p282
      %p284 = scmp.ne.s32.totalorder %s276, %s279
      %p285 = scmp.eq.s32.totalorder %s46, 0
      %p286 = por %p284, %p285
      %p287 = scmp.ne.s32.totalorder %s276, %s279
      %p288 = scmp.eq.s32.totalorder %s51, 3
      %p289 = por %p287, %p288
      %p290 = scmp.ne.s32.totalorder %s279, %s280
      %p291 = scmp.eq.s32.totalorder %s51, 0
      %p292 = por %p290, %p291
      %p293 = scmp.ne.s32.totalorder %s279, %s280
      %p294 = scmp.eq.s32.totalorder %s52, 3
      %p295 = por %p293, %p294
      %p297 = scmp.ne.s32.totalorder %s280, %s296
      %p298 = scmp.eq.s32.totalorder %s52, 0
      %p299 = por %p297, %p298
      %s300 = ssub.s32 %s54, %s61
      %p301 = scmp.eq.s32.totalorder %s300, 0
      %s303 = sadd.s32 %s302, 1
      %s304 = scalar_select %p301, %s302, %s303
      %p307 = pneg %p301
      %p308 = scmp.eq.s32.totalorder %s46, 3
      %p309 = por %p307, %p308
      %p310 = scmp.ne.s32.totalorder %s302, %s305
      %p311 = scmp.eq.s32.totalorder %s46, 0
      %p312 = por %p310, %p311
      %p313 = scmp.ne.s32.totalorder %s302, %s305
      %p314 = scmp.eq.s32.totalorder %s51, 3
      %p315 = por %p313, %p314
      %p316 = scmp.ne.s32.totalorder %s305, %s306
      %p317 = scmp.eq.s32.totalorder %s51, 0
      %p318 = por %p316, %p317
      %p319 = scmp.ne.s32.totalorder %s305, %s306
      %p320 = scmp.eq.s32.totalorder %s52, 3
      %p321 = por %p319, %p320
      %p323 = scmp.ne.s32.totalorder %s306, %s322
      %p324 = scmp.eq.s32.totalorder %s52, 0
      %p325 = por %p323, %p324
      %s326 = ssub.s32 %s54, %s61
      %p327 = scmp.eq.s32.totalorder %s326, 0
      %s329 = sadd.s32 %s328, 1
      %s330 = scalar_select %p327, %s328, %s329
      %p333 = pneg %p327
      %p334 = scmp.eq.s32.totalorder %s46, 3
      %p335 = por %p333, %p334
      %p336 = scmp.ne.s32.totalorder %s328, %s331
      %p337 = scmp.eq.s32.totalorder %s46, 0
      %p338 = por %p336, %p337
      %p339 = scmp.ne.s32.totalorder %s328, %s331
      %p340 = scmp.eq.s32.totalorder %s51, 3
      %p341 = por %p339, %p340
      %p342 = scmp.ne.s32.totalorder %s331, %s332
      %p343 = scmp.eq.s32.totalorder %s51, 0
      %p344 = por %p342, %p343
      %p345 = scmp.ne.s32.totalorder %s331, %s332
      %p346 = scmp.eq.s32.totalorder %s52, 3
      %p347 = por %p345, %p346
      %p349 = scmp.ne.s32.totalorder %s332, %s348
      %p350 = scmp.eq.s32.totalorder %s52, 0
      %p351 = por %p349, %p350
      %s352 = ssub.s32 %s54, %s61
      %p353 = scmp.eq.s32.totalorder %s352, 0
      %s355 = sadd.s32 %s354, 1
      %s356 = scalar_select %p353, %s354, %s355
      %p359 = pneg %p353
      %p360 = scmp.eq.s32.totalorder %s46, 3
      %p361 = por %p359, %p360
      %p362 = scmp.ne.s32.totalorder %s354, %s357
      %p363 = scmp.eq.s32.totalorder %s46, 0
      %p364 = por %p362, %p363
      %p365 = scmp.ne.s32.totalorder %s354, %s357
      %p366 = scmp.eq.s32.totalorder %s51, 3
      %p367 = por %p365, %p366
      %p368 = scmp.ne.s32.totalorder %s357, %s358
      %p369 = scmp.eq.s32.totalorder %s51, 0
      %p370 = por %p368, %p369
      %p371 = scmp.ne.s32.totalorder %s357, %s358
      %p372 = scmp.eq.s32.totalorder %s52, 3
      %p373 = por %p371, %p372
      %p375 = scmp.ne.s32.totalorder %s358, %s374
      %p376 = scmp.eq.s32.totalorder %s52, 0
      %p377 = por %p375, %p376
      %s378 = ssub.s32 %s54, %s61
      %p379 = scmp.eq.s32.totalorder %s378, 0
      %s381 = sadd.s32 %s380, 1
      %s382 = scalar_select %p379, %s380, %s381
      %p385 = pneg %p379
      %p386 = scmp.eq.s32.totalorder %s46, 3
      %p387 = por %p385, %p386
      %p388 = scmp.ne.s32.totalorder %s380, %s383
      %p389 = scmp.eq.s32.totalorder %s46, 0
      %p390 = por %p388, %p389
      %p391 = scmp.ne.s32.totalorder %s380, %s383
      %p392 = scmp.eq.s32.totalorder %s51, 3
      %p393 = por %p391, %p392
      %p394 = scmp.ne.s32.totalorder %s383, %s384
      %p395 = scmp.eq.s32.totalorder %s51, 0
      %p396 = por %p394, %p395
      %p397 = scmp.ne.s32.totalorder %s383, %s384
      %p398 = scmp.eq.s32.totalorder %s52, 3
      %p399 = por %p397, %p398
      %p401 = scmp.ne.s32.totalorder %s384, %s400
      %p402 = scmp.eq.s32.totalorder %s52, 0
      %p403 = por %p401, %p402
      %s404 = ssub.s32 %s54, %s61
      %p405 = scmp.eq.s32.totalorder %s404, 0
      %s407 = sadd.s32 %s406, 1
      %s408 = scalar_select %p405, %s406, %s407
      %p411 = pneg %p405
      %p412 = scmp.eq.s32.totalorder %s46, 3
      %p413 = por %p411, %p412
      %p414 = scmp.ne.s32.totalorder %s406, %s409
      %p415 = scmp.eq.s32.totalorder %s46, 0
      %p416 = por %p414, %p415
      %p417 = scmp.ne.s32.totalorder %s406, %s409
      %p418 = scmp.eq.s32.totalorder %s51, 3
      %p419 = por %p417, %p418
      %p420 = scmp.ne.s32.totalorder %s409, %s410
      %p421 = scmp.eq.s32.totalorder %s51, 0
      %p422 = por %p420, %p421
      %p423 = scmp.ne.s32.totalorder %s409, %s410
      %p424 = scmp.eq.s32.totalorder %s52, 3
      %p425 = por %p423, %p424
      %p427 = scmp.ne.s32.totalorder %s410, %s426
      %p428 = scmp.eq.s32.totalorder %s52, 0
      %p429 = por %p427, %p428
      %s430 = ssub.s32 %s54, %s61
      %p431 = scmp.eq.s32.totalorder %s430, 0
      %s433 = sadd.s32 %s432, 1
      %s434 = scalar_select %p431, %s432, %s433
      %p437 = pneg %p431
      %p438 = scmp.eq.s32.totalorder %s46, 3
      %p439 = por %p437, %p438
      %p440 = scmp.ne.s32.totalorder %s432, %s435
      %p441 = scmp.eq.s32.totalorder %s46, 0
      %p442 = por %p440, %p441
      %p443 = scmp.ne.s32.totalorder %s432, %s435
      %p444 = scmp.eq.s32.totalorder %s51, 3
      %p445 = por %p443, %p444
      %p446 = scmp.ne.s32.totalorder %s435, %s436
      %p447 = scmp.eq.s32.totalorder %s51, 0
      %p448 = por %p446, %p447
      %p449 = scmp.ne.s32.totalorder %s435, %s436
      %p450 = scmp.eq.s32.totalorder %s52, 3
      %p451 = por %p449, %p450
      %p453 = scmp.ne.s32.totalorder %s436, %s452
      %p454 = scmp.eq.s32.totalorder %s52, 0
      %p455 = por %p453, %p454
      %s456 = ssub.s32 %s54, %s61
      %p457 = scmp.eq.s32.totalorder %s456, 0
      %s459 = sadd.s32 %s458, 1
      %s460 = scalar_select %p457, %s458, %s459
      %p463 = pneg %p457
      %p464 = scmp.eq.s32.totalorder %s46, 3
      %p465 = por %p463, %p464
      %p466 = scmp.ne.s32.totalorder %s458, %s461
      %p467 = scmp.eq.s32.totalorder %s46, 0
      %p468 = por %p466, %p467
      %p469 = scmp.ne.s32.totalorder %s458, %s461
      %p470 = scmp.eq.s32.totalorder %s51, 3
      %p471 = por %p469, %p470
      %p472 = scmp.ne.s32.totalorder %s461, %s462
      %p473 = scmp.eq.s32.totalorder %s51, 0
      %p474 = por %p472, %p473
      %p475 = scmp.ne.s32.totalorder %s461, %s462
      %p476 = scmp.eq.s32.totalorder %s52, 3
      %p477 = por %p475, %p476
      %p479 = scmp.ne.s32.totalorder %s462, %s478
      %p480 = scmp.eq.s32.totalorder %s52, 0
      %p481 = por %p479, %p480
      %s482 = ssub.s32 %s54, %s61
      %p483 = scmp.eq.s32.totalorder %s482, 0
      %s485 = sadd.s32 %s484, 1
      %s486 = scalar_select %p483, %s484, %s485
      %p489 = pneg %p483
      %p490 = scmp.eq.s32.totalorder %s46, 3
      %p491 = por %p489, %p490
      %p492 = scmp.ne.s32.totalorder %s484, %s487
      %p493 = scmp.eq.s32.totalorder %s46, 0
      %p494 = por %p492, %p493
      %p495 = scmp.ne.s32.totalorder %s484, %s487
      %p496 = scmp.eq.s32.totalorder %s51, 3
      %p497 = por %p495, %p496
      %p498 = scmp.ne.s32.totalorder %s487, %s488
      %p499 = scmp.eq.s32.totalorder %s51, 0
      %p500 = por %p498, %p499
      %p501 = scmp.ne.s32.totalorder %s487, %s488
      %p502 = scmp.eq.s32.totalorder %s52, 3
      %p503 = por %p501, %p502
      %p505 = scmp.ne.s32.totalorder %s488, %s504
      %p506 = scmp.eq.s32.totalorder %s52, 0
      %p507 = por %p505, %p506
      %s508 = ssub.s32 %s54, %s61
      %p509 = scmp.eq.s32.totalorder %s508, 0
      %s511 = sadd.s32 %s510, 1
      %s512 = scalar_select %p509, %s510, %s511
      %p515 = pneg %p509
      %p516 = scmp.eq.s32.totalorder %s46, 3
      %p517 = por %p515, %p516
      %p518 = scmp.ne.s32.totalorder %s510, %s513
      %p519 = scmp.eq.s32.totalorder %s46, 0
      %p520 = por %p518, %p519
      %p521 = scmp.ne.s32.totalorder %s510, %s513
      %p522 = scmp.eq.s32.totalorder %s51, 3
      %p523 = por %p521, %p522
      %p524 = scmp.ne.s32.totalorder %s513, %s514
      %p525 = scmp.eq.s32.totalorder %s51, 0
      %p526 = por %p524, %p525
      %p527 = scmp.ne.s32.totalorder %s513, %s514
      %p528 = scmp.eq.s32.totalorder %s52, 3
      %p529 = por %p527, %p528
      %p531 = scmp.ne.s32.totalorder %s514, %s530
      %p532 = scmp.eq.s32.totalorder %s52, 0
      %p533 = por %p531, %p532
      %s534 = ssub.s32 %s54, %s61
      %p535 = scmp.eq.s32.totalorder %s534, 0
      %s537 = sadd.s32 %s536, 1
      %s538 = scalar_select %p535, %s536, %s537
      %p541 = pneg %p535
      %p542 = scmp.eq.s32.totalorder %s46, 3
      %p543 = por %p541, %p542
      %p544 = scmp.ne.s32.totalorder %s536, %s539
      %p545 = scmp.eq.s32.totalorder %s46, 0
      %p546 = por %p544, %p545
      %p547 = scmp.ne.s32.totalorder %s536, %s539
      %p548 = scmp.eq.s32.totalorder %s51, 3
      %p549 = por %p547, %p548
      %p550 = scmp.ne.s32.totalorder %s539, %s540
      %p551 = scmp.eq.s32.totalorder %s51, 0
      %p552 = por %p550, %p551
      %p553 = scmp.ne.s32.totalorder %s539, %s540
      %p554 = scmp.eq.s32.totalorder %s52, 3
      %p555 = por %p553, %p554
      %p557 = scmp.ne.s32.totalorder %s540, %s556
      %p558 = scmp.eq.s32.totalorder %s52, 0
      %p559 = por %p557, %p558
      %s560 = ssub.s32 %s54, %s61
      %p561 = scmp.eq.s32.totalorder %s560, 0
      %s563 = sadd.s32 %s562, 1
      %s564 = scalar_select %p561, %s562, %s563
      %p567 = pneg %p561
      %p568 = scmp.eq.s32.totalorder %s46, 3
      %p569 = por %p567, %p568
      %p570 = scmp.ne.s32.totalorder %s562, %s565
      %p571 = scmp.eq.s32.totalorder %s46, 0
      %p572 = por %p570, %p571
      %p573 = scmp.ne.s32.totalorder %s562, %s565
      %p574 = scmp.eq.s32.totalorder %s51, 3
      %p575 = por %p573, %p574
      %p576 = scmp.ne.s32.totalorder %s565, %s566
      %p577 = scmp.eq.s32.totalorder %s51, 0
      %p578 = por %p576, %p577
      %p579 = scmp.ne.s32.totalorder %s565, %s566
      %p580 = scmp.eq.s32.totalorder %s52, 3
      %p581 = por %p579, %p580
      %p583 = scmp.ne.s32.totalorder %s566, %s582
      %p584 = scmp.eq.s32.totalorder %s52, 0
      %p585 = por %p583, %p584
      %s586 = ssub.s32 %s54, %s61
      %p587 = scmp.eq.s32.totalorder %s586, 0
      %s589 = sadd.s32 %s588, 1
      %s590 = scalar_select %p587, %s588, %s589
      %p593 = pneg %p587
      %p594 = scmp.eq.s32.totalorder %s46, 3
      %p595 = por %p593, %p594
      %p596 = scmp.ne.s32.totalorder %s588, %s591
      %p597 = scmp.eq.s32.totalorder %s46, 0
      %p598 = por %p596, %p597
      %p599 = scmp.ne.s32.totalorder %s588, %s591
      %p600 = scmp.eq.s32.totalorder %s51, 3
      %p601 = por %p599, %p600
      %p602 = scmp.ne.s32.totalorder %s591, %s592
      %p603 = scmp.eq.s32.totalorder %s51, 0
      %p604 = por %p602, %p603
      %p605 = scmp.ne.s32.totalorder %s591, %s592
      %p606 = scmp.eq.s32.totalorder %s52, 3
      %p607 = por %p605, %p606
      %p609 = scmp.ne.s32.totalorder %s592, %s608
      %p610 = scmp.eq.s32.totalorder %s52, 0
      %p611 = por %p609, %p610
      %s612 = ssub.s32 %s54, %s61
      %p613 = scmp.eq.s32.totalorder %s612, 0
      %s615 = sadd.s32 %s614, 1
      %s616 = scalar_select %p613, %s614, %s615
      %p619 = pneg %p613
      %p620 = scmp.eq.s32.totalorder %s46, 3
      %p621 = por %p619, %p620
      %p622 = scmp.ne.s32.totalorder %s614, %s617
      %p623 = scmp.eq.s32.totalorder %s46, 0
      %p624 = por %p622, %p623
      %p625 = scmp.ne.s32.totalorder %s614, %s617
      %p626 = scmp.eq.s32.totalorder %s51, 3
      %p627 = por %p625, %p626
      %p628 = scmp.ne.s32.totalorder %s617, %s618
      %p629 = scmp.eq.s32.totalorder %s51, 0
      %p630 = por %p628, %p629
      %p631 = scmp.ne.s32.totalorder %s617, %s618
      %p632 = scmp.eq.s32.totalorder %s52, 3
      %p633 = por %p631, %p632
      %p635 = scmp.ne.s32.totalorder %s618, %s634
      %p636 = scmp.eq.s32.totalorder %s52, 0
      %p637 = por %p635, %p636
      %s638 = ssub.s32 %s54, %s61
      %p639 = scmp.eq.s32.totalorder %s638, 0
      %s641 = sadd.s32 %s640, 1
      %s642 = scalar_select %p639, %s640, %s641
      %p645 = pneg %p639
      %p646 = scmp.eq.s32.totalorder %s46, 3
      %p647 = por %p645, %p646
      %p648 = scmp.ne.s32.totalorder %s640, %s643
      %p649 = scmp.eq.s32.totalorder %s46, 0
      %p650 = por %p648, %p649
      %p651 = scmp.ne.s32.totalorder %s640, %s643
      %p652 = scmp.eq.s32.totalorder %s51, 3
      %p653 = por %p651, %p652
      %p654 = scmp.ne.s32.totalorder %s643, %s644
      %p655 = scmp.eq.s32.totalorder %s51, 0
      %p656 = por %p654, %p655
      %p657 = scmp.ne.s32.totalorder %s643, %s644
      %p658 = scmp.eq.s32.totalorder %s52, 3
      %p659 = por %p657, %p658
      %p661 = scmp.ne.s32.totalorder %s644, %s660
      %p662 = scmp.eq.s32.totalorder %s52, 0
      %p663 = por %p661, %p662
      %s664 = ssub.s32 %s54, %s61
      %p665 = scmp.eq.s32.totalorder %s664, 0
      %s667 = sadd.s32 %s666, 1
      %s668 = scalar_select %p665, %s666, %s667
      %p671 = pneg %p665
      %p672 = scmp.eq.s32.totalorder %s46, 3
      %p673 = por %p671, %p672
      %p674 = scmp.ne.s32.totalorder %s666, %s669
      %p675 = scmp.eq.s32.totalorder %s46, 0
      %p676 = por %p674, %p675
      %p677 = scmp.ne.s32.totalorder %s666, %s669
      %p678 = scmp.eq.s32.totalorder %s51, 3
      %p679 = por %p677, %p678
      %p680 = scmp.ne.s32.totalorder %s669, %s670
      %p681 = scmp.eq.s32.totalorder %s51, 0
      %p682 = por %p680, %p681
      %p683 = scmp.ne.s32.totalorder %s669, %s670
      %p684 = scmp.eq.s32.totalorder %s52, 3
      %p685 = por %p683, %p684
      %p687 = scmp.ne.s32.totalorder %s670, %s686
      %p688 = scmp.eq.s32.totalorder %s52, 0
      %p689 = por %p687, %p688
      %s690 = ssub.s32 %s54, %s61
      %p691 = scmp.eq.s32.totalorder %s690, 0
      %s693 = sadd.s32 %s692, 1
      %s694 = scalar_select %p691, %s692, %s693
      %p697 = pneg %p691
      %p698 = scmp.eq.s32.totalorder %s46, 3
      %p699 = por %p697, %p698
      %p700 = scmp.ne.s32.totalorder %s692, %s695
      %p701 = scmp.eq.s32.totalorder %s46, 0
      %p702 = por %p700, %p701
      %p703 = scmp.ne.s32.totalorder %s692, %s695
      %p704 = scmp.eq.s32.totalorder %s51, 3
      %p705 = por %p703, %p704
      %p706 = scmp.ne.s32.totalorder %s695, %s696
      %p707 = scmp.eq.s32.totalorder %s51, 0
      %p708 = por %p706, %p707
      %p709 = scmp.ne.s32.totalorder %s695, %s696
      %p710 = scmp.eq.s32.totalorder %s52, 3
      %p711 = por %p709, %p710
      %p713 = scmp.ne.s32.totalorder %s696, %s712
      %p714 = scmp.eq.s32.totalorder %s52, 0
      %p715 = por %p713, %p714
      %s716 = ssub.s32 %s53, %s65
      %p717 = scmp.eq.s32.totalorder %s716, 0
      %s719 = sadd.s32 %s718, 1
      %s720 = scalar_select %p717, %s718, %s719
      %p723 = pneg %p717
      %p724 = scmp.eq.s32.totalorder %s46, 3
      %p725 = por %p723, %p724
      %p726 = scmp.ne.s32.totalorder %s718, %s721
      %p727 = scmp.eq.s32.totalorder %s46, 0
      %p728 = por %p726, %p727
      %p729 = scmp.ne.s32.totalorder %s718, %s721
      %p730 = scmp.eq.s32.totalorder %s51, 3
      %p731 = por %p729, %p730
      %p732 = scmp.ne.s32.totalorder %s721, %s722
      %p733 = scmp.eq.s32.totalorder %s51, 0
      %p734 = por %p732, %p733
      %p735 = scmp.ne.s32.totalorder %s721, %s722
      %p736 = scmp.eq.s32.totalorder %s52, 3
      %p737 = por %p735, %p736
      %p739 = scmp.ne.s32.totalorder %s722, %s738
      %p740 = scmp.eq.s32.totalorder %s52, 0
      %p741 = por %p739, %p740
      %p742 = scmp.le.s32.totalorder 1, %s46
      %p743 = scmp.lt.s32.totalorder %s46, 5
      %p744 = pnand %p742, %p743
      %p745 = pneg %p744
      // Predicated region
      $region9: #{tpu_custom_call.1} parent=5 // pred_check
        _
      $region10: #{tpu_custom_call.1} parent=5 // pred_check_branch
        %747 = sbr.rel (%p744) target = $region12
      $region11: #{tpu_custom_call.1} parent=5 // pred_region
        %s748 = ssub.s32 %s46, 1
      $region12: #{tpu_custom_call.1} parent=5 // pred_fallthru
        _
      %p749 = scmp.lt.s32.totalorder %s46, 4
      // Predicated region
      $region13: #{tpu_custom_call.1} parent=5 // pred_check
        %p750 = pneg %p749
      $region14: #{tpu_custom_call.1} parent=5 // pred_check_branch
        %752 = sbr.rel (%p750) target = $region16
      $region15: #{tpu_custom_call.1} parent=5 // pred_region
        // Predicated region
        $region17: #{tpu_custom_call.1} parent=15 // pred_check
          %p753 = pneg %p78
        $region18: #{tpu_custom_call.1} parent=15 // pred_check_branch
          %755 = sbr.rel (%p753) target = $region20
        $region19: #{tpu_custom_call.1} parent=15 // pred_region
          %p756 = scmp.lt.s32.totalorder %s53, 1
          %s757 = scalar_select %p756, %s53, 1
          %s758 = smul.addr %s757, 8
          %s759 = scalar_lea.vmem %s0, %s758
        $region20: #{tpu_custom_call.1} parent=15 // pred_fallthru
          _
        // Predicated region
        $region21: #{tpu_custom_call.1} parent=15 // pred_check
          %p760 = pneg %p104
        $region22: #{tpu_custom_call.1} parent=15 // pred_check_branch
          %762 = sbr.rel (%p760) target = $region24
        $region23: #{tpu_custom_call.1} parent=15 // pred_region
          %s763 = sand.u32 %s94, 1
          %s764 = scalar_lea.sflag [#allocation3], %s763
          %s765 = sand.u32 %s94, 1
          %s766 = smul.addr %s765, 8
          %s767 = scalar_lea.vmem [#allocation2], %s766
          %769 = vsyncadd %s764, 0
          %s770 = smul.addr %s53, 8
          %s771 = scalar_lea.hbm %s1, %s770
          %s773 = sshll.u32 %s771, 4
          %s774 = int_to_ptr.hbm [resolvable:$true] %s773
          %s775 = sshll.u32 %s767, 4
          %s776 = int_to_ptr.vmem [resolvable:$true] %s775
          %778 = dma.hbm_to_vmem [thread:$0]  %s774, 128, %s776, %s764
        $region24: #{tpu_custom_call.1} parent=15 // pred_fallthru
          _
        // Predicated region
        $region25: #{tpu_custom_call.1} parent=15 // pred_check
          %p779 = pneg %p130
        $region26: #{tpu_custom_call.1} parent=15 // pred_check_branch
          %781 = sbr.rel (%p779) target = $region28
        $region27: #{tpu_custom_call.1} parent=15 // pred_region
          %p782 = scmp.lt.s32.totalorder %s53, 1
          %s783 = scalar_select %p782, %s53, 1
          %s784 = smul.addr %s783, 8
          %s785 = scalar_lea.vmem %s2, %s784
        $region28: #{tpu_custom_call.1} parent=15 // pred_fallthru
          _
        // Predicated region
        $region29: #{tpu_custom_call.1} parent=15 // pred_check
          %p786 = pneg %p156
        $region30: #{tpu_custom_call.1} parent=15 // pred_check_branch
          %788 = sbr.rel (%p786) target = $region32
        $region31: #{tpu_custom_call.1} parent=15 // pred_region
          %s789 = sand.u32 %s46, 1
          %s790 = scalar_lea.sflag [#allocation6], %s789
          %s791 = sand.u32 %s146, 1
          %s792 = smul.addr %s791, 8
          %s793 = scalar_lea.vmem [#allocation5], %s792
          %795 = vsyncadd %s790, 0
          %s796 = smul.addr %s53, 8
          %s797 = scalar_lea.hbm %s3, %s796
          %s799 = sshll.u32 %s797, 4
          %s800 = int_to_ptr.hbm [resolvable:$true] %s799
          %s801 = sshll.u32 %s793, 4
          %s802 = int_to_ptr.vmem [resolvable:$true] %s801
          %804 = dma.hbm_to_vmem [thread:$0]  %s800, 128, %s802, %s790
        $region32: #{tpu_custom_call.1} parent=15 // pred_fallthru
          _
        // Predicated region
        $region33: #{tpu_custom_call.1} parent=15 // pred_check
          %p805 = pneg %p182
        $region34: #{tpu_custom_call.1} parent=15 // pred_check_branch
          %807 = sbr.rel (%p805) target = $region36
        $region35: #{tpu_custom_call.1} parent=15 // pred_region
          %s808 = sand.u32 %s46, 1
          %s809 = scalar_lea.sflag [#allocation6], %s808
          %s810 = sand.u32 %s172, 1
          %s811 = smul.addr %s810, 8
          %s812 = scalar_lea.vmem [#allocation7], %s811
          %814 = vsyncadd %s809, 0
          %s815 = smul.addr %s53, 8
          %s816 = scalar_lea.hbm %s4, %s815
          %s818 = sshll.u32 %s816, 4
          %s819 = int_to_ptr.hbm [resolvable:$true] %s818
          %s820 = sshll.u32 %s812, 4
          %s821 = int_to_ptr.vmem [resolvable:$true] %s820
          %823 = dma.hbm_to_vmem [thread:$0]  %s819, 128, %s821, %s809
        $region36: #{tpu_custom_call.1} parent=15 // pred_fallthru
          _
        // Predicated region
        $region37: #{tpu_custom_call.1} parent=15 // pred_check
          %p824 = pneg %p208
        $region38: #{tpu_custom_call.1} parent=15 // pred_check_branch
          %826 = sbr.rel (%p824) target = $region40
        $region39: #{tpu_custom_call.1} parent=15 // pred_region
          %p827 = scmp.lt.s32.totalorder %s54, 1
          %s828 = scalar_select %p827, %s54, 1
          %s829 = smul.addr %s828, 4
          %s830 = smul.addr %s829, 8
          %s831 = scalar_lea.vmem %s5, %s830
        $region40: #{tpu_custom_call.1} parent=15 // pred_fallthru
          _
        // Predicated region
        $region41: #{tpu_custom_call.1} parent=15 // pred_check
          %p832 = pneg %p234
        $region42: #{tpu_custom_call.1} parent=15 // pred_check_branch
          %834 = sbr.rel (%p832) target = $region44
        $region43: #{tpu_custom_call.1} parent=15 // pred_region
          %p835 = scmp.lt.s32.totalorder %s54, 1
          %s836 = scalar_select %p835, %s54, 1
          %s837 = scalar_lea.vmem %s6, %s836
        $region44: #{tpu_custom_call.1} parent=15 // pred_fallthru
          _
        // Predicated region
        $region45: #{tpu_custom_call.1} parent=15 // pred_check
          %p838 = pneg %p260
        $region46: #{tpu_custom_call.1} parent=15 // pred_check_branch
          %840 = sbr.rel (%p838) target = $region48
        $region47: #{tpu_custom_call.1} parent=15 // pred_region
          %p841 = scmp.lt.s32.totalorder %s54, 1
          %s842 = scalar_select %p841, %s54, 1
          %s843 = smul.addr %s842, 4
          %s844 = smul.addr %s843, 8
          %s845 = scalar_lea.vmem %s7, %s844
        $region48: #{tpu_custom_call.1} parent=15 // pred_fallthru
          _
        // Predicated region
        $region49: #{tpu_custom_call.1} parent=15 // pred_check
          %p846 = pneg %p286
        $region50: #{tpu_custom_call.1} parent=15 // pred_check_branch
          %848 = sbr.rel (%p846) target = $region52
        $region51: #{tpu_custom_call.1} parent=15 // pred_region
          %p849 = scmp.lt.s32.totalorder %s54, 1
          %s850 = scalar_select %p849, %s54, 1
          %s851 = scalar_lea.vmem %s8, %s850
        $region52: #{tpu_custom_call.1} parent=15 // pred_fallthru
          _
        // Predicated region
        $region53: #{tpu_custom_call.1} parent=15 // pred_check
          %p852 = pneg %p312
        $region54: #{tpu_custom_call.1} parent=15 // pred_check_branch
          %854 = sbr.rel (%p852) target = $region56
        $region55: #{tpu_custom_call.1} parent=15 // pred_region
          %p855 = scmp.lt.s32.totalorder %s54, 1
          %s856 = scalar_select %p855, %s54, 1
          %s857 = scalar_lea.vmem %s9, %s856
        $region56: #{tpu_custom_call.1} parent=15 // pred_fallthru
          _
        // Predicated region
        $region57: #{tpu_custom_call.1} parent=15 // pred_check
          %p858 = pneg %p338
        $region58: #{tpu_custom_call.1} parent=15 // pred_check_branch
          %860 = sbr.rel (%p858) target = $region60
        $region59: #{tpu_custom_call.1} parent=15 // pred_region
          %p861 = scmp.lt.s32.totalorder %s54, 1
          %s862 = scalar_select %p861, %s54, 1
          %s863 = scalar_lea.vmem %s10, %s862
        $region60: #{tpu_custom_call.1} parent=15 // pred_fallthru
          _
        // Predicated region
        $region61: #{tpu_custom_call.1} parent=15 // pred_check
          %p864 = pneg %p364
        $region62: #{tpu_custom_call.1} parent=15 // pred_check_branch
          %866 = sbr.rel (%p864) target = $region64
        $region63: #{tpu_custom_call.1} parent=15 // pred_region
          %p867 = scmp.lt.s32.totalorder %s54, 1
          %s868 = scalar_select %p867, %s54, 1
          %s869 = smul.addr %s868, 4
          %s870 = smul.addr %s869, 8
          %s871 = scalar_lea.vmem %s11, %s870
        $region64: #{tpu_custom_call.1} parent=15 // pred_fallthru
          _
        // Predicated region
        $region65: #{tpu_custom_call.1} parent=15 // pred_check
          %p872 = pneg %p390
        $region66: #{tpu_custom_call.1} parent=15 // pred_check_branch
          %874 = sbr.rel (%p872) target = $region68
        $region67: #{tpu_custom_call.1} parent=15 // pred_region
          %p875 = scmp.lt.s32.totalorder %s54, 1
          %s876 = scalar_select %p875, %s54, 1
          %s877 = scalar_lea.vmem %s12, %s876
        $region68: #{tpu_custom_call.1} parent=15 // pred_fallthru
          _
        // Predicated region
        $region69: #{tpu_custom_call.1} parent=15 // pred_check
          %p878 = pneg %p416
        $region70: #{tpu_custom_call.1} parent=15 // pred_check_branch
          %880 = sbr.rel (%p878) target = $region72
        $region71: #{tpu_custom_call.1} parent=15 // pred_region
          %s881 = sand.u32 %s46, 1
          %s882 = scalar_lea.sflag [#allocation9], %s881
          %s883 = sand.u32 %s406, 1
          %s884 = smul.addr %s883, 32
          %s885 = scalar_lea.vmem [#allocation8], %s884
          %887 = vsyncadd %s882, 0
          %s888 = smul.addr %s54, 4
          %s889 = smul.addr %s888, 8
          %s890 = scalar_lea.hbm %s13, %s889
          %s891 = sshll.u32 %s890, 4
          %s892 = int_to_ptr.hbm [resolvable:$true] %s891
          %s893 = sshll.u32 %s885, 4
          %s894 = int_to_ptr.vmem [resolvable:$true] %s893
          %899 = dma.hbm_to_vmem [thread:$0]  %s892, 512, %s894, %s882, 128, 128, 8
        $region72: #{tpu_custom_call.1} parent=15 // pred_fallthru
          _
        // Predicated region
        $region73: #{tpu_custom_call.1} parent=15 // pred_check
          %p900 = pneg %p442
        $region74: #{tpu_custom_call.1} parent=15 // pred_check_branch
          %902 = sbr.rel (%p900) target = $region76
        $region75: #{tpu_custom_call.1} parent=15 // pred_region
          %p903 = scmp.lt.s32.totalorder %s54, 1
          %s904 = scalar_select %p903, %s54, 1
          %s905 = scalar_lea.vmem %s14, %s904
        $region76: #{tpu_custom_call.1} parent=15 // pred_fallthru
          _
        // Predicated region
        $region77: #{tpu_custom_call.1} parent=15 // pred_check
          %p906 = pneg %p468
        $region78: #{tpu_custom_call.1} parent=15 // pred_check_branch
          %908 = sbr.rel (%p906) target = $region80
        $region79: #{tpu_custom_call.1} parent=15 // pred_region
          %s909 = sand.u32 %s46, 1
          %s910 = scalar_lea.sflag [#allocation9], %s909
          %s911 = sand.u32 %s458, 1
          %s912 = smul.addr %s911, 32
          %s913 = scalar_lea.vmem [#allocation10], %s912
          %915 = vsyncadd %s910, 0
          %s916 = smul.addr %s54, 4
          %s917 = smul.addr %s916, 8
          %s918 = scalar_lea.hbm %s15, %s917
          %s919 = sshll.u32 %s918, 4
          %s920 = int_to_ptr.hbm [resolvable:$true] %s919
          %s921 = sshll.u32 %s913, 4
          %s922 = int_to_ptr.vmem [resolvable:$true] %s921
          %927 = dma.hbm_to_vmem [thread:$0]  %s920, 512, %s922, %s910, 128, 128, 8
        $region80: #{tpu_custom_call.1} parent=15 // pred_fallthru
          _
        // Predicated region
        $region81: #{tpu_custom_call.1} parent=15 // pred_check
          %p928 = pneg %p494
        $region82: #{tpu_custom_call.1} parent=15 // pred_check_branch
          %930 = sbr.rel (%p928) target = $region84
        $region83: #{tpu_custom_call.1} parent=15 // pred_region
          %p931 = scmp.lt.s32.totalorder %s54, 1
          %s932 = scalar_select %p931, %s54, 1
          %s933 = scalar_lea.vmem %s16, %s932
        $region84: #{tpu_custom_call.1} parent=15 // pred_fallthru
          _
        // Predicated region
        $region85: #{tpu_custom_call.1} parent=15 // pred_check
          %p934 = pneg %p520
        $region86: #{tpu_custom_call.1} parent=15 // pred_check_branch
          %936 = sbr.rel (%p934) target = $region88
        $region87: #{tpu_custom_call.1} parent=15 // pred_region
          %p937 = scmp.lt.s32.totalorder %s54, 1
          %s938 = scalar_select %p937, %s54, 1
          %s939 = scalar_lea.vmem %s17, %s938
        $region88: #{tpu_custom_call.1} parent=15 // pred_fallthru
          _
        // Predicated region
        $region89: #{tpu_custom_call.1} parent=15 // pred_check
          %p940 = pneg %p546
        $region90: #{tpu_custom_call.1} parent=15 // pred_check_branch
          %942 = sbr.rel (%p940) target = $region92
        $region91: #{tpu_custom_call.1} parent=15 // pred_region
          %p943 = scmp.lt.s32.totalorder %s54, 1
          %s944 = scalar_select %p943, %s54, 1
          %s945 = scalar_lea.vmem %s18, %s944
        $region92: #{tpu_custom_call.1} parent=15 // pred_fallthru
          _
        // Predicated region
        $region93: #{tpu_custom_call.1} parent=15 // pred_check
          %p946 = pneg %p572
        $region94: #{tpu_custom_call.1} parent=15 // pred_check_branch
          %948 = sbr.rel (%p946) target = $region96
        $region95: #{tpu_custom_call.1} parent=15 // pred_region
          %s949 = sand.u32 %s46, 1
          %s950 = scalar_lea.sflag [#allocation12], %s949
          %s951 = sand.u32 %s562, 1
          %s952 = smul.addr %s951, 32
          %s953 = scalar_lea.vmem [#allocation11], %s952
          %955 = vsyncadd %s950, 0
          %s956 = smul.addr %s54, 4
          %s957 = smul.addr %s956, 8
          %s958 = scalar_lea.hbm %s19, %s957
          %s959 = sshll.u32 %s958, 4
          %s960 = int_to_ptr.hbm [resolvable:$true] %s959
          %s961 = sshll.u32 %s953, 4
          %s962 = int_to_ptr.vmem [resolvable:$true] %s961
          %967 = dma.hbm_to_vmem [thread:$0]  %s960, 512, %s962, %s950, 128, 128, 8
        $region96: #{tpu_custom_call.1} parent=15 // pred_fallthru
          _
        // Predicated region
        $region97: #{tpu_custom_call.1} parent=15 // pred_check
          %p968 = pneg %p598
        $region98: #{tpu_custom_call.1} parent=15 // pred_check_branch
          %970 = sbr.rel (%p968) target = $region100
        $region99: #{tpu_custom_call.1} parent=15 // pred_region
          %s971 = sand.u32 %s46, 1
          %s972 = scalar_lea.sflag [#allocation12], %s971
          %s973 = sand.u32 %s588, 1
          %s974 = scalar_lea.vmem [#allocation13], %s973
          %976 = vsyncadd %s972, 0
          %s977 = scalar_lea.hbm %s20, %s54
          %s979 = sshll.u32 %s977, 4
          %s980 = int_to_ptr.hbm [resolvable:$true] %s979
          %s981 = sshll.u32 %s974, 4
          %s982 = int_to_ptr.vmem [resolvable:$true] %s981
          %984 = dma.hbm_to_vmem [thread:$0]  %s980, 16, %s982, %s972
        $region100: #{tpu_custom_call.1} parent=15 // pred_fallthru
          _
        // Predicated region
        $region101: #{tpu_custom_call.1} parent=15 // pred_check
          %p985 = pneg %p624
        $region102: #{tpu_custom_call.1} parent=15 // pred_check_branch
          %987 = sbr.rel (%p985) target = $region104
        $region103: #{tpu_custom_call.1} parent=15 // pred_region
          %p988 = scmp.lt.s32.totalorder %s54, 1
          %s989 = scalar_select %p988, %s54, 1
          %s990 = smul.addr %s989, 8
          %s991 = smul.addr %s990, 8
          %s992 = scalar_lea.vmem %s21, %s991
        $region104: #{tpu_custom_call.1} parent=15 // pred_fallthru
          _
        // Predicated region
        $region105: #{tpu_custom_call.1} parent=15 // pred_check
          %p993 = pneg %p650
        $region106: #{tpu_custom_call.1} parent=15 // pred_check_branch
          %995 = sbr.rel (%p993) target = $region108
        $region107: #{tpu_custom_call.1} parent=15 // pred_region
          %p996 = scmp.lt.s32.totalorder %s54, 1
          %s997 = scalar_select %p996, %s54, 1
          %s998 = scalar_lea.vmem %s22, %s997
        $region108: #{tpu_custom_call.1} parent=15 // pred_fallthru
          _
        // Predicated region
        $region109: #{tpu_custom_call.1} parent=15 // pred_check
          %p999 = pneg %p676
        $region110: #{tpu_custom_call.1} parent=15 // pred_check_branch
          %1001 = sbr.rel (%p999) target = $region112
        $region111: #{tpu_custom_call.1} parent=15 // pred_region
          %p1002 = scmp.lt.s32.totalorder %s54, 1
          %s1003 = scalar_select %p1002, %s54, 1
          %s1004 = scalar_lea.vmem %s23, %s1003
        $region112: #{tpu_custom_call.1} parent=15 // pred_fallthru
          _
        // Predicated region
        $region113: #{tpu_custom_call.1} parent=15 // pred_check
          %p1005 = pneg %p702
        $region114: #{tpu_custom_call.1} parent=15 // pred_check_branch
          %1007 = sbr.rel (%p1005) target = $region116
        $region115: #{tpu_custom_call.1} parent=15 // pred_region
          %p1008 = scmp.lt.s32.totalorder %s54, 1
          %s1009 = scalar_select %p1008, %s54, 1
          %s1010 = scalar_lea.vmem %s24, %s1009
        $region116: #{tpu_custom_call.1} parent=15 // pred_fallthru
          _
      $region16: #{tpu_custom_call.1} parent=5 // pred_fallthru
        _
      %p1011 = scmp.le.s32.totalorder 1, %s46
      %p1012 = scmp.lt.s32.totalorder %s46, 5
      %p1013 = pnand %p1011, %p1012
      %p1014 = pneg %p1013
      // Predicated region
      $region117: #{tpu_custom_call.1} parent=5 // pred_check
        _
      $region118: #{tpu_custom_call.1} parent=5 // pred_check_branch
        %1016 = sbr.rel (%p1013) target = $region120
      $region119: #{tpu_custom_call.1} parent=5 // pred_region
        %s1017 = ssub.s32 %s46, 1
        %s1018 = sand.u32 %s97, 1
        %s1019 = scalar_lea.sflag [#allocation3], %s1018
        %s1020 = sand.u32 %s97, 1
        %s1021 = smul.addr %s1020, 8
        %s1022 = scalar_lea.vmem [#allocation2], %s1021
        // Predicated region
        $region121: #{tpu_custom_call.1} parent=119 // pred_check
          %p1023 = pneg %p110
        $region122: #{tpu_custom_call.1} parent=119 // pred_check_branch
          %1025 = sbr.rel (%p1023) target = $region124
        $region123: #{tpu_custom_call.1} parent=119 // pred_region
          %1027 = dma.done %s1019, 128
        $region124: #{tpu_custom_call.1} parent=119 // pred_fallthru
          _
        %s1028 = sand.u32 %s51, 1
        %s1029 = scalar_lea.sflag [#allocation6], %s1028
        %s1030 = sand.u32 %s149, 1
        %s1031 = smul.addr %s1030, 8
        %s1032 = scalar_lea.vmem [#allocation5], %s1031
        // Predicated region
        $region125: #{tpu_custom_call.1} parent=119 // pred_check
          %p1033 = pneg %p162
        $region126: #{tpu_custom_call.1} parent=119 // pred_check_branch
          %1035 = sbr.rel (%p1033) target = $region128
        $region127: #{tpu_custom_call.1} parent=119 // pred_region
          %1037 = dma.done %s1029, 128
        $region128: #{tpu_custom_call.1} parent=119 // pred_fallthru
          _
        %s1038 = sand.u32 %s51, 1
        %s1039 = scalar_lea.sflag [#allocation6], %s1038
        %s1040 = sand.u32 %s175, 1
        %s1041 = smul.addr %s1040, 8
        %s1042 = scalar_lea.vmem [#allocation7], %s1041
        // Predicated region
        $region129: #{tpu_custom_call.1} parent=119 // pred_check
          %p1043 = pneg %p188
        $region130: #{tpu_custom_call.1} parent=119 // pred_check_branch
          %1045 = sbr.rel (%p1043) target = $region132
        $region131: #{tpu_custom_call.1} parent=119 // pred_region
          %1047 = dma.done %s1039, 128
        $region132: #{tpu_custom_call.1} parent=119 // pred_fallthru
          _
        %s1048 = sand.u32 %s51, 1
        %s1049 = scalar_lea.sflag [#allocation9], %s1048
        %s1050 = sand.u32 %s409, 1
        %s1051 = smul.addr %s1050, 32
        %s1052 = scalar_lea.vmem [#allocation8], %s1051
        // Predicated region
        $region133: #{tpu_custom_call.1} parent=119 // pred_check
          %p1053 = pneg %p422
        $region134: #{tpu_custom_call.1} parent=119 // pred_check_branch
          %1055 = sbr.rel (%p1053) target = $region136
        $region135: #{tpu_custom_call.1} parent=119 // pred_region
          %1057 = dma.done %s1049, 512
        $region136: #{tpu_custom_call.1} parent=119 // pred_fallthru
          _
        %s1058 = sand.u32 %s51, 1
        %s1059 = scalar_lea.sflag [#allocation9], %s1058
        %s1060 = sand.u32 %s461, 1
        %s1061 = smul.addr %s1060, 32
        %s1062 = scalar_lea.vmem [#allocation10], %s1061
        // Predicated region
        $region137: #{tpu_custom_call.1} parent=119 // pred_check
          %p1063 = pneg %p474
        $region138: #{tpu_custom_call.1} parent=119 // pred_check_branch
          %1065 = sbr.rel (%p1063) target = $region140
        $region139: #{tpu_custom_call.1} parent=119 // pred_region
          %1067 = dma.done %s1059, 512
        $region140: #{tpu_custom_call.1} parent=119 // pred_fallthru
          _
        %s1068 = sand.u32 %s51, 1
        %s1069 = scalar_lea.sflag [#allocation12], %s1068
        %s1070 = sand.u32 %s565, 1
        %s1071 = smul.addr %s1070, 32
        %s1072 = scalar_lea.vmem [#allocation11], %s1071
        // Predicated region
        $region141: #{tpu_custom_call.1} parent=119 // pred_check
          %p1073 = pneg %p578
        $region142: #{tpu_custom_call.1} parent=119 // pred_check_branch
          %1075 = sbr.rel (%p1073) target = $region144
        $region143: #{tpu_custom_call.1} parent=119 // pred_region
          %1077 = dma.done %s1069, 512
        $region144: #{tpu_custom_call.1} parent=119 // pred_fallthru
          _
        %s1078 = sand.u32 %s51, 1
        %s1079 = scalar_lea.sflag [#allocation12], %s1078
        %s1080 = sand.u32 %s591, 1
        %s1081 = scalar_lea.vmem [#allocation13], %s1080
        // Predicated region
        $region145: #{tpu_custom_call.1} parent=119 // pred_check
          %p1082 = pneg %p604
        $region146: #{tpu_custom_call.1} parent=119 // pred_check_branch
          %1084 = sbr.rel (%p1082) target = $region148
        $region147: #{tpu_custom_call.1} parent=119 // pred_region
          %1086 = dma.done %s1079, 16
        $region148: #{tpu_custom_call.1} parent=119 // pred_fallthru
          _
        %p1087 = scmp.lt.s32.totalorder %s55, 1
        %s1088 = scalar_select %p1087, %s55, 1
        %s1089 = smul.addr %s1088, 8
        %s1090 = scalar_lea.vmem %s0, %s1089
        %p1091 = pneg %p84
        %p1092 = pneg %p81
        %s1093 = sand.u32 %s97, 1
        %s1094 = scalar_lea.sflag [#allocation3], %s1093
        %s1095 = sand.u32 %s97, 1
        %s1096 = smul.addr %s1095, 8
        %s1097 = scalar_lea.vmem [#allocation2], %s1096
        %p1098 = pneg %p110
        %p1099 = pneg %p107
        %p1100 = scmp.lt.s32.totalorder %s55, 1
        %s1101 = scalar_select %p1100, %s55, 1
        %s1102 = smul.addr %s1101, 8
        %s1103 = scalar_lea.vmem %s2, %s1102
        %p1104 = pneg %p136
        %p1105 = pneg %p133
        %s1106 = sand.u32 %s51, 1
        %s1107 = scalar_lea.sflag [#allocation6], %s1106
        %s1108 = sand.u32 %s149, 1
        %s1109 = smul.addr %s1108, 8
        %s1110 = scalar_lea.vmem [#allocation5], %s1109
        %p1111 = pneg %p162
        %p1112 = pneg %p159
        %s1113 = sand.u32 %s51, 1
        %s1114 = scalar_lea.sflag [#allocation6], %s1113
        %s1115 = sand.u32 %s175, 1
        %s1116 = smul.addr %s1115, 8
        %s1117 = scalar_lea.vmem [#allocation7], %s1116
        %p1118 = pneg %p188
        %p1119 = pneg %p185
        %p1120 = scmp.lt.s32.totalorder %s56, 1
        %s1121 = scalar_select %p1120, %s56, 1
        %s1122 = smul.addr %s1121, 4
        %s1123 = smul.addr %s1122, 8
        %s1124 = scalar_lea.vmem %s5, %s1123
        %p1125 = pneg %p214
        %p1126 = pneg %p211
        %p1127 = scmp.lt.s32.totalorder %s56, 1
        %s1128 = scalar_select %p1127, %s56, 1
        %s1129 = scalar_lea.vmem %s6, %s1128
        %p1130 = pneg %p240
        %p1131 = pneg %p237
        %p1132 = scmp.lt.s32.totalorder %s56, 1
        %s1133 = scalar_select %p1132, %s56, 1
        %s1134 = smul.addr %s1133, 4
        %s1135 = smul.addr %s1134, 8
        %s1136 = scalar_lea.vmem %s7, %s1135
        %p1137 = pneg %p266
        %p1138 = pneg %p263
        %p1139 = scmp.lt.s32.totalorder %s56, 1
        %s1140 = scalar_select %p1139, %s56, 1
        %s1141 = scalar_lea.vmem %s8, %s1140
        %p1142 = pneg %p292
        %p1143 = pneg %p289
        %p1144 = scmp.lt.s32.totalorder %s56, 1
        %s1145 = scalar_select %p1144, %s56, 1
        %s1146 = scalar_lea.vmem %s9, %s1145
        %p1147 = pneg %p318
        %p1148 = pneg %p315
        %p1149 = scmp.lt.s32.totalorder %s56, 1
        %s1150 = scalar_select %p1149, %s56, 1
        %s1151 = scalar_lea.vmem %s10, %s1150
        %p1152 = pneg %p344
        %p1153 = pneg %p341
        %p1154 = scmp.lt.s32.totalorder %s56, 1
        %s1155 = scalar_select %p1154, %s56, 1
        %s1156 = smul.addr %s1155, 4
        %s1157 = smul.addr %s1156, 8
        %s1158 = scalar_lea.vmem %s11, %s1157
        %p1159 = pneg %p370
        %p1160 = pneg %p367
        %p1161 = scmp.lt.s32.totalorder %s56, 1
        %s1162 = scalar_select %p1161, %s56, 1
        %s1163 = scalar_lea.vmem %s12, %s1162
        %p1164 = pneg %p396
        %p1165 = pneg %p393
        %s1166 = sand.u32 %s51, 1
        %s1167 = scalar_lea.sflag [#allocation9], %s1166
        %s1168 = sand.u32 %s409, 1
        %s1169 = smul.addr %s1168, 32
        %s1170 = scalar_lea.vmem [#allocation8], %s1169
        %p1171 = pneg %p422
        %p1172 = pneg %p419
        %p1173 = scmp.lt.s32.totalorder %s56, 1
        %s1174 = scalar_select %p1173, %s56, 1
        %s1175 = scalar_lea.vmem %s14, %s1174
        %p1176 = pneg %p448
        %p1177 = pneg %p445
        %s1178 = sand.u32 %s51, 1
        %s1179 = scalar_lea.sflag [#allocation9], %s1178
        %s1180 = sand.u32 %s461, 1
        %s1181 = smul.addr %s1180, 32
        %s1182 = scalar_lea.vmem [#allocation10], %s1181
        %p1183 = pneg %p474
        %p1184 = pneg %p471
        %p1185 = scmp.lt.s32.totalorder %s56, 1
        %s1186 = scalar_select %p1185, %s56, 1
        %s1187 = scalar_lea.vmem %s16, %s1186
        %p1188 = pneg %p500
        %p1189 = pneg %p497
        %p1190 = scmp.lt.s32.totalorder %s56, 1
        %s1191 = scalar_select %p1190, %s56, 1
        %s1192 = scalar_lea.vmem %s17, %s1191
        %p1193 = pneg %p526
        %p1194 = pneg %p523
        %p1195 = scmp.lt.s32.totalorder %s56, 1
        %s1196 = scalar_select %p1195, %s56, 1
        %s1197 = scalar_lea.vmem %s18, %s1196
        %p1198 = pneg %p552
        %p1199 = pneg %p549
        %s1200 = sand.u32 %s51, 1
        %s1201 = scalar_lea.sflag [#allocation12], %s1200
        %s1202 = sand.u32 %s565, 1
        %s1203 = smul.addr %s1202, 32
        %s1204 = scalar_lea.vmem [#allocation11], %s1203
        %p1205 = pneg %p578
        %p1206 = pneg %p575
        %s1207 = sand.u32 %s51, 1
        %s1208 = scalar_lea.sflag [#allocation12], %s1207
        %s1209 = sand.u32 %s591, 1
        %s1210 = scalar_lea.vmem [#allocation13], %s1209
        %p1211 = pneg %p604
        %p1212 = pneg %p601
        %p1213 = scmp.lt.s32.totalorder %s56, 1
        %s1214 = scalar_select %p1213, %s56, 1
        %s1215 = smul.addr %s1214, 8
        %s1216 = smul.addr %s1215, 8
        %s1217 = scalar_lea.vmem %s21, %s1216
        %p1218 = pneg %p630
        %p1219 = pneg %p627
        %p1220 = scmp.lt.s32.totalorder %s56, 1
        %s1221 = scalar_select %p1220, %s56, 1
        %s1222 = scalar_lea.vmem %s22, %s1221
        %p1223 = pneg %p656
        %p1224 = pneg %p653
        %p1225 = scmp.lt.s32.totalorder %s56, 1
        %s1226 = scalar_select %p1225, %s56, 1
        %s1227 = scalar_lea.vmem %s23, %s1226
        %p1228 = pneg %p682
        %p1229 = pneg %p679
        %p1230 = scmp.lt.s32.totalorder %s56, 1
        %s1231 = scalar_select %p1230, %s56, 1
        %s1232 = scalar_lea.vmem %s24, %s1231
        %p1233 = pneg %p708
        %p1234 = pneg %p705
        %p1235 = pneg %p734
        %p1236 = pneg %p731
        %s1237 = sand.u32 %s721, 1
        %s1238 = scalar_lea.sflag [#allocation4], %s1237
        %s1239 = sand.u32 %s721, 1
        %s1240 = smul.addr %s1239, 8
        %s1241 = scalar_lea.vmem [#allocation14], %s1240
        %p1242 = scmp.lt.s32.totalorder %s55, 1
        %s1243 = scalar_select %p1242, %s55, 1
        %s1244 = smul.addr %s1243, 8
        %s1245 = scalar_lea.vmem %s0, %s1244
        %p1246 = scmp.lt.s32.totalorder %s55, 1
        %s1247 = scalar_select %p1246, %s55, 1
        %s1248 = smul.addr %s1247, 8
        %s1249 = scalar_lea.vmem %s2, %s1248
        %p1250 = scmp.lt.s32.totalorder %s56, 1
        %s1251 = scalar_select %p1250, %s56, 1
        %s1252 = smul.addr %s1251, 4
        %s1253 = smul.addr %s1252, 8
        %s1254 = scalar_lea.vmem %s5, %s1253
        %p1255 = scmp.lt.s32.totalorder %s56, 1
        %s1256 = scalar_select %p1255, %s56, 1
        %s1257 = scalar_lea.vmem %s6, %s1256
        %p1258 = scmp.lt.s32.totalorder %s56, 1
        %s1259 = scalar_select %p1258, %s56, 1
        %s1260 = smul.addr %s1259, 4
        %s1261 = smul.addr %s1260, 8
        %s1262 = scalar_lea.vmem %s7, %s1261
        %p1263 = scmp.lt.s32.totalorder %s56, 1
        %s1264 = scalar_select %p1263, %s56, 1
        %s1265 = scalar_lea.vmem %s8, %s1264
        %p1266 = scmp.lt.s32.totalorder %s56, 1
        %s1267 = scalar_select %p1266, %s56, 1
        %s1268 = scalar_lea.vmem %s9, %s1267
        %p1269 = scmp.lt.s32.totalorder %s56, 1
        %s1270 = scalar_select %p1269, %s56, 1
        %s1271 = scalar_lea.vmem %s10, %s1270
        %p1272 = scmp.lt.s32.totalorder %s56, 1
        %s1273 = scalar_select %p1272, %s56, 1
        %s1274 = smul.addr %s1273, 4
        %s1275 = smul.addr %s1274, 8
        %s1276 = scalar_lea.vmem %s11, %s1275
        %p1277 = scmp.lt.s32.totalorder %s56, 1
        %s1278 = scalar_select %p1277, %s56, 1
        %s1279 = scalar_lea.vmem %s12, %s1278
        %p1280 = scmp.lt.s32.totalorder %s56, 1
        %s1281 = scalar_select %p1280, %s56, 1
        %s1282 = scalar_lea.vmem %s14, %s1281
        %p1283 = scmp.lt.s32.totalorder %s56, 1
        %s1284 = scalar_select %p1283, %s56, 1
        %s1285 = scalar_lea.vmem %s16, %s1284
        %p1286 = scmp.lt.s32.totalorder %s56, 1
        %s1287 = scalar_select %p1286, %s56, 1
        %s1288 = scalar_lea.vmem %s17, %s1287
        %p1289 = scmp.lt.s32.totalorder %s56, 1
        %s1290 = scalar_select %p1289, %s56, 1
        %s1291 = scalar_lea.vmem %s18, %s1290
        %p1292 = scmp.lt.s32.totalorder %s56, 1
        %s1293 = scalar_select %p1292, %s56, 1
        %s1294 = smul.addr %s1293, 8
        %s1295 = smul.addr %s1294, 8
        %s1296 = scalar_lea.vmem %s21, %s1295
        %p1297 = scmp.lt.s32.totalorder %s56, 1
        %s1298 = scalar_select %p1297, %s56, 1
        %s1299 = scalar_lea.vmem %s22, %s1298
        %p1300 = scmp.lt.s32.totalorder %s56, 1
        %s1301 = scalar_select %p1300, %s56, 1
        %s1302 = scalar_lea.vmem %s23, %s1301
        %p1303 = scmp.lt.s32.totalorder %s56, 1
        %s1304 = scalar_select %p1303, %s56, 1
        %s1305 = scalar_lea.vmem %s24, %s1304
        %p1306 = scmp.eq.s32.totalorder %s56, 0
        // Predicated region
        $region149: #{tpu_custom_call.1} parent=119 // pred_check
          %p1307 = pneg %p1306
        $region150: #{tpu_custom_call.1} parent=119 // pred_check_branch
          %1309 = sbr.rel (%p1307) target = $region152
        $region151: #{tpu_custom_call.1} parent=119 // pred_region
          %v1310 = vld [vmem:[%s1245] sm:$0xff]
          %vm1311 = vcmask 261120
          %1312 = vst.msk [vmem:[%s1241] sm:$0xff] %vm1311, %v1310
        $region152: #{tpu_custom_call.1} parent=119 // pred_fallthru
          _
        %v1313 = vld [vmem:[%s1241] sm:$0xff]
        %v1314 = vld [vmem:[%s1022] sm:$0xff]
        %v1315 = vld [vmem:[%s1249] sm:$0xff]
        %v1316 = vld [vmem:[%s1254] sm:$0xff]
        %v1317 = vld [vmem:[%s1254 + $0x8] sm:$0xff]
        %v1318 = vld [vmem:[%s1254 + $0x10] sm:$0xff]
        %v1319 = vld [vmem:[%s1254 + $0x18] sm:$0xff]
        %v1320 = vld [vmem:[%s1257] sm:$0x1]
        %v1322 = vperm.slane %v1320, 0
        %vm1324 = vcmask 261120
        %v1326 = vsel %vm1324, %v1313, 0
        %1328 = vmatpush.msra.mxu0 0.0
        %1329 = vmatpush.msra.mxu0 0.0
        %1330 = vmatpush.msra.mxu0 0.0
        %1331 = vmatpush.msra.mxu0 0.0
        %1332 = vmatpush.msra.mxu0 0.0
        %1333 = vmatpush.msra.mxu0 0.0
        %1334 = vmatpush.msra.mxu0 0.0
        %1335 = vmatpush.msra.mxu0 0.0
        %1336 = vmatpush.msra.mxu0 0.0
        %1337 = vmatpush.msra.mxu0 0.0
        %1338 = vmatpush.msra.mxu0 0.0
        %1339 = vmatpush.msra.mxu0 0.0
        %1340 = vmatpush.msra.mxu0 %v1319
        %1341 = vmatpush.msra.mxu0 %v1318
        %1342 = vmatpush.msra.mxu0 %v1317
        %1343 = vmatpush.msra.mxu0 %v1316
        %1344 = vmatmul.f32.gmra.mxu0 %v1326
        %v1345 = vpop.f32.mrf.mxu0
        %v1346 = vadd.f32 %v1322, %v1345
        %1347 = vdwg.mxu0
        %v1348 = vld [vmem:[%s1032] sm:$0xff]
        %v1349 = vld [vmem:[%s1262] sm:$0xff]
        %v1350 = vld [vmem:[%s1262 + $0x8] sm:$0xff]
        %v1351 = vld [vmem:[%s1262 + $0x10] sm:$0xff]
        %v1352 = vld [vmem:[%s1262 + $0x18] sm:$0xff]
        %v1353 = vld [vmem:[%s1265] sm:$0x1]
        %v1354 = vld [vmem:[%s1268] sm:$0x1]
        %v1355 = vld [vmem:[%s1271] sm:$0x1]
        %1357 = vrot.lane.b32.xlu0 %v1346, 112
        %v1358 = vpop.permute.xlu0 %1357
        %1359 = vrot.lane.b32.xlu0 %v1346, 96
        %v1360 = vpop.permute.xlu0 %1359
        %vm1361 = vcmask 130048
        %v1362 = vsel %vm1361, %v1346, 0
        %v1364 = vsel %vm1361, %v1360, 0
        %1366 = vmatpush.xpose.msra.mxu0 0.0
        %1367 = vmatpush.xpose.msra.mxu0 0.0
        %1368 = vmatpush.xpose.msra.mxu0 0.0
        %1369 = vmatpush.xpose.msra.mxu0 0.0
        %1370 = vmatpush.xpose.msra.mxu0 0.0
        %1371 = vmatpush.xpose.msra.mxu0 0.0
        %1372 = vmatpush.xpose.msra.mxu0 0.0
        %1373 = vmatpush.xpose.msra.mxu0 0.0
        %1374 = vmatpush.xpose.msra.mxu0 0.0
        %1375 = vmatpush.xpose.msra.mxu0 0.0
        %1376 = vmatpush.xpose.msra.mxu0 0.0
        %1377 = vmatpush.xpose.msra.mxu0 0.0
        %1378 = vmatpush.xpose.msra.mxu0 0.0
        %1379 = vmatpush.xpose.msra.mxu0 0.0
        %1380 = vmatpush.xpose.msra.mxu0 0.0
        %1381 = vmatpush.xpose.msra.mxu0 %v1364
        %1382 = vmatmul.f32.gmra.mxu0 %v1362
        %v1383 = vpop.f32.mrf.mxu0
        %v1384 = vadd.f32 0.0, %v1383
        %1385 = vdwg.mxu0
        %1386 = vrot.lane.b32.xlu0 %v1358, 96
        %v1387 = vpop.permute.xlu0 %1386
        %v1388 = vsel %vm1361, %v1358, 0
        %v1390 = vsel %vm1361, %v1387, 0
        %1392 = vmatpush.xpose.msra.mxu0 0.0
        %1393 = vmatpush.xpose.msra.mxu0 0.0
        %1394 = vmatpush.xpose.msra.mxu0 0.0
        %1395 = vmatpush.xpose.msra.mxu0 0.0
        %1396 = vmatpush.xpose.msra.mxu0 0.0
        %1397 = vmatpush.xpose.msra.mxu0 0.0
        %1398 = vmatpush.xpose.msra.mxu0 0.0
        %1399 = vmatpush.xpose.msra.mxu0 0.0
        %1400 = vmatpush.xpose.msra.mxu0 0.0
        %1401 = vmatpush.xpose.msra.mxu0 0.0
        %1402 = vmatpush.xpose.msra.mxu0 0.0
        %1403 = vmatpush.xpose.msra.mxu0 0.0
        %1404 = vmatpush.xpose.msra.mxu0 0.0
        %1405 = vmatpush.xpose.msra.mxu0 0.0
        %1406 = vmatpush.xpose.msra.mxu0 0.0
        %1407 = vmatpush.xpose.msra.mxu0 %v1390
        %1408 = vmatmul.f32.gmra.mxu0 %v1388
        %v1409 = vpop.f32.mrf.mxu0
        %v1410 = vadd.f32 0.0, %v1409
        %1411 = vdwg.mxu0
        %vm1412 = vcmp.gt.f32.partialorder %v1348, 0.0
        %v1413 = vsel %vm1412, 1, 0
        %vm1414 = vcmp.eq.s32.totalorder %v1413, 1
        %v1415 = vsel %vm1414, -1e+30, %v1384
        %v1416 = vsel %vm1414, -1e+30, %v1410
        %vm1417 = vcmask 64512
        %v1418 = vsel %vm1417, %v1415, -inf
        %1419 = vmax.xlane.f32.xlu0 %v1418
        %v1420 = vpop.xlane.xlu0 %1419
        %v1421 = vsel %vm1417, %v1416, -inf
        %1422 = vmax.xlane.f32.xlu0 %v1421
        %v1423 = vpop.xlane.xlu0 %1422
        %v1424 = vsub.f32 %v1415, %v1420
        %v1425 = vsub.f32 %v1416, %v1423
        %v1426 = vmul.f32 %v1424, 1.442695
        %v1427 = vpow.pop %v1426
        %v1428 = vmul.f32 %v1425, 1.442695
        %v1429 = vpow.pop %v1428
        %v1430 = vsel %vm1417, %v1427, 0.0
        %1431 = vadd.xlane.f32.xlu0 %v1430
        %v1432 = vpop.xlane.xlu0 %1431
        %v1433 = vsel %vm1417, %v1429, 0.0
        %1434 = vadd.xlane.f32.xlu0 %v1433
        %v1435 = vpop.xlane.xlu0 %1434
        %v1436 = vrcp.pop %v1432
        %v1437 = vrcp.pop %v1435
        %v1438 = vmul.f32 %v1427, %v1436
        %v1439 = vmul.f32 %v1429, %v1437
        %1440 = vrot.lane.b32.xlu0 %v1346, 64
        %v1441 = vpop.permute.xlu0 %1440
        %v1444 = vsel %vm1417, %v1438, 0
        %1446 = vmatpush.msra.mxu0 0.0
        %1447 = vmatpush.msra.mxu0 0.0
        %1448 = vmatpush.msra.mxu0 0.0
        %1449 = vmatpush.msra.mxu0 0.0
        %1450 = vmatpush.msra.mxu0 0.0
        %1451 = vmatpush.msra.mxu0 0.0
        %1452 = vmatpush.msra.mxu0 0.0
        %1453 = vmatpush.msra.mxu0 0.0
        %1454 = vmatpush.msra.mxu0 0.0
        %1455 = vmatpush.msra.mxu0 0.0
        %1456 = vmatpush.msra.mxu0 0.0
        %1457 = vmatpush.msra.mxu0 0.0
        %1458 = vmatpush.msra.mxu0 0.0
        %1459 = vmatpush.msra.mxu0 0.0
        %1460 = vmatpush.msra.mxu0 0.0
        %1461 = vmatpush.msra.mxu0 %v1441
        %1462 = vmatmul.f32.gmra.mxu0 %v1444
        %v1463 = vpop.f32.mrf.mxu0
        %v1464 = vadd.f32 0.0, %v1463
        %1465 = vdwg.mxu0
        %1466 = vrot.lane.b32.xlu0 %v1358, 64
        %v1467 = vpop.permute.xlu0 %1466
        %v1470 = vsel %vm1417, %v1439, 0
        %1472 = vmatpush.msra.mxu0 0.0
        %1473 = vmatpush.msra.mxu0 0.0
        %1474 = vmatpush.msra.mxu0 0.0
        %1475 = vmatpush.msra.mxu0 0.0
        %1476 = vmatpush.msra.mxu0 0.0
        %1477 = vmatpush.msra.mxu0 0.0
        %1478 = vmatpush.msra.mxu0 0.0
        %1479 = vmatpush.msra.mxu0 0.0
        %1480 = vmatpush.msra.mxu0 0.0
        %1481 = vmatpush.msra.mxu0 0.0
        %1482 = vmatpush.msra.mxu0 0.0
        %1483 = vmatpush.msra.mxu0 0.0
        %1484 = vmatpush.msra.mxu0 0.0
        %1485 = vmatpush.msra.mxu0 0.0
        %1486 = vmatpush.msra.mxu0 0.0
        %1487 = vmatpush.msra.mxu0 %v1467
        %1488 = vmatmul.f32.gmra.mxu0 %v1470
        %v1489 = vpop.f32.mrf.mxu0
        %v1490 = vadd.f32 0.0, %v1489
        %1491 = vdwg.mxu0
        %1493 = vrot.lane.b32.xlu0 %v1490, 16
        %v1494 = vpop.permute.xlu0 %1493
        %v1496 = vsel %vm1361, %v1464, %v1494
        %v1498 = vperm.slane %v1353, 0
        %v1501 = vsel %vm1324, %v1496, 0
        %1503 = vmatpush.msra.mxu0 0.0
        %1504 = vmatpush.msra.mxu0 0.0
        %1505 = vmatpush.msra.mxu0 0.0
        %1506 = vmatpush.msra.mxu0 0.0
        %1507 = vmatpush.msra.mxu0 0.0
        %1508 = vmatpush.msra.mxu0 0.0
        %1509 = vmatpush.msra.mxu0 0.0
        %1510 = vmatpush.msra.mxu0 0.0
        %1511 = vmatpush.msra.mxu0 0.0
        %1512 = vmatpush.msra.mxu0 0.0
        %1513 = vmatpush.msra.mxu0 0.0
        %1514 = vmatpush.msra.mxu0 0.0
        %1515 = vmatpush.msra.mxu0 %v1352
        %1516 = vmatpush.msra.mxu0 %v1351
        %1517 = vmatpush.msra.mxu0 %v1350
        %1518 = vmatpush.msra.mxu0 %v1349
        %1519 = vmatmul.f32.gmra.mxu0 %v1501
        %v1520 = vpop.f32.mrf.mxu0
        %v1521 = vadd.f32 %v1498, %v1520
        %1522 = vdwg.mxu0
        %v1523 = vadd.f32 %v1521, %v1313
        %v1524 = vsel %vm1324, %v1523, 0.0
        %1525 = vadd.xlane.f32.xlu0 %v1524
        %v1526 = vpop.xlane.xlu0 %1525
        %v1527 = vrcp.pop 32.0
        %v1528 = vmul.f32 32.0, %v1527
        %v1529 = vsub.f32 1.0, %v1528
        %v1530 = vmul.f32 %v1527, %v1529
        %v1531 = vadd.f32 %v1527, %v1530
        %vm1532 = vweird.f32 %v1527
        %v1533 = vsel %vm1532, %v1527, %v1531
        %v1534 = vmul.f32 %v1526, %v1533
        %v1535 = vsub.f32 %v1523, %v1534
        %v1536 = vmul.f32 %v1535, %v1535
        %v1537 = vsel %vm1324, %v1536, 0.0
        %1538 = vadd.xlane.f32.xlu0 %v1537
        %v1539 = vpop.xlane.xlu0 %1538
        %v1540 = vmul.f32 %v1539, %v1533
        %v1541 = vadd.f32 %v1540, 1e-05
        %v1542 = vrsqrt.pop %v1541
        %v1543 = vmul.f32 %v1542, %v1541
        %v1544 = vmul.f32 %v1543, %v1542
        %v1545 = vmul.f32 0.5, %v1544
        %v1546 = vsub.f32 1.5, %v1545
        %v1547 = vmul.f32 %v1542, %v1546
        %vm1548 = vweird.f32 %v1541
        %vm1549 = vweird.f32 %v1542
        %vm1550 = vmor %vm1548, %vm1549
        %v1551 = vsel %vm1550, %v1542, %v1547
        %v1552 = vmul.f32 %v1535, %v1551
        %v1554 = vperm.slane %v1354, 0
        %v1556 = vmul.f32 %v1552, %v1554
        %v1558 = vperm.slane %v1355, 0
        %v1560 = vadd.f32 %v1556, %v1558
        %1562 = vset.pattern.permute.xlu0 0
        %1563 = vperm.xlu0 %1562, %v1315
        %v1564 = vpop.permute.xlu0 %1563
        %v1566 = vmul.f32 %v1560, %v1564
        %v1567 = vld [vmem:[%s1276] sm:$0xff]
        %v1568 = vld [vmem:[%s1276 + $0x8] sm:$0xff]
        %v1569 = vld [vmem:[%s1276 + $0x10] sm:$0xff]
        %v1570 = vld [vmem:[%s1276 + $0x18] sm:$0xff]
        %v1571 = vld [vmem:[%s1279] sm:$0x1]
        %v1573 = vperm.slane %v1571, 0
        %v1576 = vsel %vm1324, %v1566, 0
        %1578 = vmatpush.msra.mxu0 0.0
        %1579 = vmatpush.msra.mxu0 0.0
        %1580 = vmatpush.msra.mxu0 0.0
        %1581 = vmatpush.msra.mxu0 0.0
        %1582 = vmatpush.msra.mxu0 0.0
        %1583 = vmatpush.msra.mxu0 0.0
        %1584 = vmatpush.msra.mxu0 0.0
        %1585 = vmatpush.msra.mxu0 0.0
        %1586 = vmatpush.msra.mxu0 0.0
        %1587 = vmatpush.msra.mxu0 0.0
        %1588 = vmatpush.msra.mxu0 0.0
        %1589 = vmatpush.msra.mxu0 0.0
        %1590 = vmatpush.msra.mxu0 %v1570
        %1591 = vmatpush.msra.mxu0 %v1569
        %1592 = vmatpush.msra.mxu0 %v1568
        %1593 = vmatpush.msra.mxu0 %v1567
        %1594 = vmatmul.f32.gmra.mxu0 %v1576
        %v1595 = vpop.f32.mrf.mxu0
        %v1596 = vadd.f32 %v1573, %v1595
        %1597 = vdwg.mxu0
        %v1598 = vld [vmem:[%s1052] sm:$0xff]
        %v1599 = vld [vmem:[%s1052 + $0x8] sm:$0xff]
        %v1600 = vld [vmem:[%s1052 + $0x10] sm:$0xff]
        %v1601 = vld [vmem:[%s1052 + $0x18] sm:$0xff]
        %v1602 = vld [vmem:[%s1282] sm:$0x1]
        %v1604 = vperm.slane %v1602, 0
        %v1607 = vsel %vm1324, %v1314, 0
        %1609 = vmatpush.msra.mxu0 0.0
        %1610 = vmatpush.msra.mxu0 0.0
        %1611 = vmatpush.msra.mxu0 0.0
        %1612 = vmatpush.msra.mxu0 0.0
        %1613 = vmatpush.msra.mxu0 0.0
        %1614 = vmatpush.msra.mxu0 0.0
        %1615 = vmatpush.msra.mxu0 0.0
        %1616 = vmatpush.msra.mxu0 0.0
        %1617 = vmatpush.msra.mxu0 0.0
        %1618 = vmatpush.msra.mxu0 0.0
        %1619 = vmatpush.msra.mxu0 0.0
        %1620 = vmatpush.msra.mxu0 0.0
        %1621 = vmatpush.msra.mxu0 %v1601
        %1622 = vmatpush.msra.mxu0 %v1600
        %1623 = vmatpush.msra.mxu0 %v1599
        %1624 = vmatpush.msra.mxu0 %v1598
        %1625 = vmatmul.f32.gmra.mxu0 %v1607
        %v1626 = vpop.f32.mrf.mxu0
        %v1627 = vadd.f32 %v1604, %v1626
        %1628 = vdwg.mxu0
        %v1629 = vld [vmem:[%s1042] sm:$0xff]
        %v1630 = vld [vmem:[%s1062] sm:$0xff]
        %v1631 = vld [vmem:[%s1062 + $0x8] sm:$0xff]
        %v1632 = vld [vmem:[%s1062 + $0x10] sm:$0xff]
        %v1633 = vld [vmem:[%s1062 + $0x18] sm:$0xff]
        %v1634 = vld [vmem:[%s1285] sm:$0x1]
        %v1635 = vld [vmem:[%s1288] sm:$0x1]
        %v1636 = vld [vmem:[%s1291] sm:$0x1]
        %1638 = vrot.lane.b32.xlu0 %v1596, 112
        %v1639 = vpop.permute.xlu0 %1638
        %1641 = vrot.lane.b32.xlu0 %v1627, 112
        %v1642 = vpop.permute.xlu0 %1641
        %v1643 = vsel %vm1361, %v1596, 0
        %v1645 = vsel %vm1361, %v1627, 0
        %1647 = vmatpush.xpose.msra.mxu0 0.0
        %1648 = vmatpush.xpose.msra.mxu0 0.0
        %1649 = vmatpush.xpose.msra.mxu0 0.0
        %1650 = vmatpush.xpose.msra.mxu0 0.0
        %1651 = vmatpush.xpose.msra.mxu0 0.0
        %1652 = vmatpush.xpose.msra.mxu0 0.0
        %1653 = vmatpush.xpose.msra.mxu0 0.0
        %1654 = vmatpush.xpose.msra.mxu0 0.0
        %1655 = vmatpush.xpose.msra.mxu0 0.0
        %1656 = vmatpush.xpose.msra.mxu0 0.0
        %1657 = vmatpush.xpose.msra.mxu0 0.0
        %1658 = vmatpush.xpose.msra.mxu0 0.0
        %1659 = vmatpush.xpose.msra.mxu0 0.0
        %1660 = vmatpush.xpose.msra.mxu0 0.0
        %1661 = vmatpush.xpose.msra.mxu0 0.0
        %1662 = vmatpush.xpose.msra.mxu0 %v1645
        %1663 = vmatmul.f32.gmra.mxu0 %v1643
        %v1664 = vpop.f32.mrf.mxu0
        %v1665 = vadd.f32 0.0, %v1664
        %1666 = vdwg.mxu0
        %v1667 = vsel %vm1361, %v1639, 0
        %v1669 = vsel %vm1361, %v1642, 0
        %1671 = vmatpush.xpose.msra.mxu0 0.0
        %1672 = vmatpush.xpose.msra.mxu0 0.0
        %1673 = vmatpush.xpose.msra.mxu0 0.0
        %1674 = vmatpush.xpose.msra.mxu0 0.0
        %1675 = vmatpush.xpose.msra.mxu0 0.0
        %1676 = vmatpush.xpose.msra.mxu0 0.0
        %1677 = vmatpush.xpose.msra.mxu0 0.0
        %1678 = vmatpush.xpose.msra.mxu0 0.0
        %1679 = vmatpush.xpose.msra.mxu0 0.0
        %1680 = vmatpush.xpose.msra.mxu0 0.0
        %1681 = vmatpush.xpose.msra.mxu0 0.0
        %1682 = vmatpush.xpose.msra.mxu0 0.0
        %1683 = vmatpush.xpose.msra.mxu0 0.0
        %1684 = vmatpush.xpose.msra.mxu0 0.0
        %1685 = vmatpush.xpose.msra.mxu0 0.0
        %1686 = vmatpush.xpose.msra.mxu0 %v1669
        %1687 = vmatmul.f32.gmra.mxu0 %v1667
        %v1688 = vpop.f32.mrf.mxu0
        %v1689 = vadd.f32 0.0, %v1688
        %1690 = vdwg.mxu0
        %vm1691 = vcmp.gt.f32.partialorder %v1629, 0.0
        %v1692 = vsel %vm1691, 1, 0
        %vm1693 = vcmp.eq.s32.totalorder %v1692, 1
        %v1694 = vsel %vm1693, -1e+30, %v1665
        %v1695 = vsel %vm1693, -1e+30, %v1689
        %v1696 = vsel %vm1417, %v1694, -inf
        %1697 = vmax.xlane.f32.xlu0 %v1696
        %v1698 = vpop.xlane.xlu0 %1697
        %v1699 = vsel %vm1417, %v1695, -inf
        %1700 = vmax.xlane.f32.xlu0 %v1699
        %v1701 = vpop.xlane.xlu0 %1700
        %v1702 = vsub.f32 %v1694, %v1698
        %v1703 = vsub.f32 %v1695, %v1701
        %v1704 = vmul.f32 %v1702, 1.442695
        %v1705 = vpow.pop %v1704
        %v1706 = vmul.f32 %v1703, 1.442695
        %v1707 = vpow.pop %v1706
        %v1708 = vsel %vm1417, %v1705, 0.0
        %1709 = vadd.xlane.f32.xlu0 %v1708
        %v1710 = vpop.xlane.xlu0 %1709
        %v1711 = vsel %vm1417, %v1707, 0.0
        %1712 = vadd.xlane.f32.xlu0 %v1711
        %v1713 = vpop.xlane.xlu0 %1712
        %v1714 = vrcp.pop %v1710
        %v1715 = vrcp.pop %v1713
        %v1716 = vmul.f32 %v1705, %v1714
        %v1717 = vmul.f32 %v1707, %v1715
        %1718 = vrot.lane.b32.xlu0 %v1627, 96
        %v1719 = vpop.permute.xlu0 %1718
        %v1722 = vsel %vm1417, %v1716, 0
        %1724 = vmatpush.msra.mxu0 0.0
        %1725 = vmatpush.msra.mxu0 0.0
        %1726 = vmatpush.msra.mxu0 0.0
        %1727 = vmatpush.msra.mxu0 0.0
        %1728 = vmatpush.msra.mxu0 0.0
        %1729 = vmatpush.msra.mxu0 0.0
        %1730 = vmatpush.msra.mxu0 0.0
        %1731 = vmatpush.msra.mxu0 0.0
        %1732 = vmatpush.msra.mxu0 0.0
        %1733 = vmatpush.msra.mxu0 0.0
        %1734 = vmatpush.msra.mxu0 0.0
        %1735 = vmatpush.msra.mxu0 0.0
        %1736 = vmatpush.msra.mxu0 0.0
        %1737 = vmatpush.msra.mxu0 0.0
        %1738 = vmatpush.msra.mxu0 0.0
        %1739 = vmatpush.msra.mxu0 %v1719
        %1740 = vmatmul.f32.gmra.mxu0 %v1722
        %v1741 = vpop.f32.mrf.mxu0
        %v1742 = vadd.f32 0.0, %v1741
        %1743 = vdwg.mxu0
        %1744 = vrot.lane.b32.xlu0 %v1642, 96
        %v1745 = vpop.permute.xlu0 %1744
        %v1748 = vsel %vm1417, %v1717, 0
        %1750 = vmatpush.msra.mxu0 0.0
        %1751 = vmatpush.msra.mxu0 0.0
        %1752 = vmatpush.msra.mxu0 0.0
        %1753 = vmatpush.msra.mxu0 0.0
        %1754 = vmatpush.msra.mxu0 0.0
        %1755 = vmatpush.msra.mxu0 0.0
        %1756 = vmatpush.msra.mxu0 0.0
        %1757 = vmatpush.msra.mxu0 0.0
        %1758 = vmatpush.msra.mxu0 0.0
        %1759 = vmatpush.msra.mxu0 0.0
        %1760 = vmatpush.msra.mxu0 0.0
        %1761 = vmatpush.msra.mxu0 0.0
        %1762 = vmatpush.msra.mxu0 0.0
        %1763 = vmatpush.msra.mxu0 0.0
        %1764 = vmatpush.msra.mxu0 0.0
        %1765 = vmatpush.msra.mxu0 %v1745
        %1766 = vmatmul.f32.gmra.mxu0 %v1748
        %v1767 = vpop.f32.mrf.mxu0
        %v1768 = vadd.f32 0.0, %v1767
        %1769 = vdwg.mxu0
        %1771 = vrot.lane.b32.xlu0 %v1768, 16
        %v1772 = vpop.permute.xlu0 %1771
        %v1774 = vsel %vm1361, %v1742, %v1772
        %v1776 = vperm.slane %v1634, 0
        %v1779 = vsel %vm1324, %v1774, 0
        %1781 = vmatpush.msra.mxu0 0.0
        %1782 = vmatpush.msra.mxu0 0.0
        %1783 = vmatpush.msra.mxu0 0.0
        %1784 = vmatpush.msra.mxu0 0.0
        %1785 = vmatpush.msra.mxu0 0.0
        %1786 = vmatpush.msra.mxu0 0.0
        %1787 = vmatpush.msra.mxu0 0.0
        %1788 = vmatpush.msra.mxu0 0.0
        %1789 = vmatpush.msra.mxu0 0.0
        %1790 = vmatpush.msra.mxu0 0.0
        %1791 = vmatpush.msra.mxu0 0.0
        %1792 = vmatpush.msra.mxu0 0.0
        %1793 = vmatpush.msra.mxu0 %v1633
        %1794 = vmatpush.msra.mxu0 %v1632
        %1795 = vmatpush.msra.mxu0 %v1631
        %1796 = vmatpush.msra.mxu0 %v1630
        %1797 = vmatmul.f32.gmra.mxu0 %v1779
        %v1798 = vpop.f32.mrf.mxu0
        %v1799 = vadd.f32 %v1776, %v1798
        %1800 = vdwg.mxu0
        %v1801 = vadd.f32 %v1799, %v1566
        %v1802 = vsel %vm1324, %v1801, 0.0
        %1803 = vadd.xlane.f32.xlu0 %v1802
        %v1804 = vpop.xlane.xlu0 %1803
        %v1805 = vmul.f32 %v1804, %v1533
        %v1806 = vsub.f32 %v1801, %v1805
        %v1807 = vmul.f32 %v1806, %v1806
        %v1808 = vsel %vm1324, %v1807, 0.0
        %1809 = vadd.xlane.f32.xlu0 %v1808
        %v1810 = vpop.xlane.xlu0 %1809
        %v1811 = vmul.f32 %v1810, %v1533
        %v1812 = vadd.f32 %v1811, 1e-05
        %v1813 = vrsqrt.pop %v1812
        %v1814 = vmul.f32 %v1813, %v1812
        %v1815 = vmul.f32 %v1814, %v1813
        %v1816 = vmul.f32 0.5, %v1815
        %v1817 = vsub.f32 1.5, %v1816
        %v1818 = vmul.f32 %v1813, %v1817
        %vm1819 = vweird.f32 %v1812
        %vm1820 = vweird.f32 %v1813
        %vm1821 = vmor %vm1819, %vm1820
        %v1822 = vsel %vm1821, %v1813, %v1818
        %v1823 = vmul.f32 %v1806, %v1822
        %v1825 = vperm.slane %v1635, 0
        %v1827 = vmul.f32 %v1823, %v1825
        %v1829 = vperm.slane %v1636, 0
        %v1831 = vadd.f32 %v1827, %v1829
        %v1832 = vmul.f32 %v1831, %v1564
        %v1833 = vld [vmem:[%s1072] sm:$0xff]
        %v1834 = vld [vmem:[%s1072 + $0x8] sm:$0xff]
        %v1835 = vld [vmem:[%s1072 + $0x10] sm:$0xff]
        %v1836 = vld [vmem:[%s1072 + $0x18] sm:$0xff]
        %v1837 = vld [vmem:[%s1081] sm:$0x1]
        %v1839 = vperm.slane %v1837, 0
        %v1842 = vsel %vm1324, %v1832, 0
        %1844 = vmatpush.msra.mxu0 0.0
        %1845 = vmatpush.msra.mxu0 0.0
        %1846 = vmatpush.msra.mxu0 0.0
        %1847 = vmatpush.msra.mxu0 0.0
        %1848 = vmatpush.msra.mxu0 0.0
        %1849 = vmatpush.msra.mxu0 0.0
        %1850 = vmatpush.msra.mxu0 0.0
        %1851 = vmatpush.msra.mxu0 0.0
        %1852 = vmatpush.msra.mxu0 0.0
        %1853 = vmatpush.msra.mxu0 0.0
        %1854 = vmatpush.msra.mxu0 0.0
        %1855 = vmatpush.msra.mxu0 0.0
        %1856 = vmatpush.msra.mxu0 %v1836
        %1857 = vmatpush.msra.mxu0 %v1835
        %1858 = vmatpush.msra.mxu0 %v1834
        %1859 = vmatpush.msra.mxu0 %v1833
        %1860 = vmatmul.f32.gmra.mxu0 %v1842
        %v1861 = vpop.f32.mrf.mxu0
        %v1862 = vadd.f32 %v1839, %v1861
        %1863 = vdwg.mxu0
        %v1864 = vmax.f32 %v1862, 0.0
        %v1865 = vld [vmem:[%s1296] sm:$0xff]
        %v1866 = vld [vmem:[%s1296 + $0x8] sm:$0xff]
        %v1867 = vld [vmem:[%s1296 + $0x10] sm:$0xff]
        %v1868 = vld [vmem:[%s1296 + $0x18] sm:$0xff]
        %v1869 = vld [vmem:[%s1296 + $0x20] sm:$0xff]
        %v1870 = vld [vmem:[%s1296 + $0x28] sm:$0xff]
        %v1871 = vld [vmem:[%s1296 + $0x30] sm:$0xff]
        %v1872 = vld [vmem:[%s1296 + $0x38] sm:$0xff]
        %v1873 = vld [vmem:[%s1299] sm:$0x1]
        %v1875 = vperm.slane %v1873, 0
        %vm1877 = vcmask 523264
        %v1879 = vsel %vm1877, %v1864, 0
        %1881 = vmatpush.msra.mxu0 0.0
        %1882 = vmatpush.msra.mxu0 0.0
        %1883 = vmatpush.msra.mxu0 0.0
        %1884 = vmatpush.msra.mxu0 0.0
        %1885 = vmatpush.msra.mxu0 0.0
        %1886 = vmatpush.msra.mxu0 0.0
        %1887 = vmatpush.msra.mxu0 0.0
        %1888 = vmatpush.msra.mxu0 0.0
        %1889 = vmatpush.msra.mxu0 %v1872
        %1890 = vmatpush.msra.mxu0 %v1871
        %1891 = vmatpush.msra.mxu0 %v1870
        %1892 = vmatpush.msra.mxu0 %v1869
        %1893 = vmatpush.msra.mxu0 %v1868
        %1894 = vmatpush.msra.mxu0 %v1867
        %1895 = vmatpush.msra.mxu0 %v1866
        %1896 = vmatpush.msra.mxu0 %v1865
        %1897 = vmatmul.f32.gmra.mxu0 %v1879
        %v1898 = vpop.f32.mrf.mxu0
        %v1899 = vadd.f32 %v1875, %v1898
        %1900 = vdwg.mxu0
        %v1901 = vadd.f32 %v1899, %v1832
        %v1902 = vld [vmem:[%s1302] sm:$0x1]
        %v1903 = vld [vmem:[%s1305] sm:$0x1]
        %v1904 = vsel %vm1324, %v1901, 0.0
        %1905 = vadd.xlane.f32.xlu0 %v1904
        %v1906 = vpop.xlane.xlu0 %1905
        %v1907 = vmul.f32 %v1906, %v1533
        %v1908 = vsub.f32 %v1901, %v1907
        %v1909 = vmul.f32 %v1908, %v1908
        %v1910 = vsel %vm1324, %v1909, 0.0
        %1911 = vadd.xlane.f32.xlu0 %v1910
        %v1912 = vpop.xlane.xlu0 %1911
        %v1913 = vmul.f32 %v1912, %v1533
        %v1914 = vadd.f32 %v1913, 1e-05
        %v1915 = vrsqrt.pop %v1914
        %v1916 = vmul.f32 %v1915, %v1914
        %v1917 = vmul.f32 %v1916, %v1915
        %v1918 = vmul.f32 0.5, %v1917
        %v1919 = vsub.f32 1.5, %v1918
        %v1920 = vmul.f32 %v1915, %v1919
        %vm1921 = vweird.f32 %v1914
        %vm1922 = vweird.f32 %v1915
        %vm1923 = vmor %vm1921, %vm1922
        %v1924 = vsel %vm1923, %v1915, %v1920
        %v1925 = vmul.f32 %v1908, %v1924
        %v1927 = vperm.slane %v1902, 0
        %v1929 = vmul.f32 %v1925, %v1927
        %v1931 = vperm.slane %v1903, 0
        %v1933 = vadd.f32 %v1929, %v1931
        %v1934 = vmul.f32 %v1933, %v1564
        %1935 = vst.msk [vmem:[%s1241] sm:$0xff] %vm1324, %v1934
        %s1936 = sand.u32 %s721, 1
        %s1937 = scalar_lea.sflag [#allocation4], %s1936
        %s1938 = sand.u32 %s721, 1
        %s1939 = smul.addr %s1938, 8
        %s1940 = scalar_lea.vmem [#allocation14], %s1939
        // Predicated region
        $region153: #{tpu_custom_call.1} parent=119 // pred_check
          %p1941 = pneg %p731
        $region154: #{tpu_custom_call.1} parent=119 // pred_check_branch
          %1943 = sbr.rel (%p1941) target = $region156
        $region155: #{tpu_custom_call.1} parent=119 // pred_region
          %1945 = vsyncadd %s1937, 0
          %s1946 = smul.addr %s55, 8
          %s1947 = scalar_lea.hbm %s25, %s1946
          %s1949 = sshll.u32 %s1940, 4
          %s1950 = int_to_ptr.vmem [resolvable:$true] %s1949
          %s1951 = sshll.u32 %s1947, 4
          %s1952 = int_to_ptr.hbm [resolvable:$true] %s1951
          %1954 = dma.vmem_to_hbm [thread:$0]  %s1950, 128, %s1952, %s1937
        $region156: #{tpu_custom_call.1} parent=119 // pred_fallthru
          _
      $region120: #{tpu_custom_call.1} parent=5 // pred_fallthru
        _
      %p1955 = scmp.le.s32.totalorder 2, %s46
      // Predicated region
      $region157: #{tpu_custom_call.1} parent=5 // pred_check
        %p1956 = pneg %p1955
      $region158: #{tpu_custom_call.1} parent=5 // pred_check_branch
        %1958 = sbr.rel (%p1956) target = $region160
      $region159: #{tpu_custom_call.1} parent=5 // pred_region
        %s1959 = ssub.s32 %s46, 2
        // Predicated region
        $region161: #{tpu_custom_call.1} parent=159 // pred_check
          %p1960 = pneg %p737
        $region162: #{tpu_custom_call.1} parent=159 // pred_check_branch
          %1962 = sbr.rel (%p1960) target = $region164
        $region163: #{tpu_custom_call.1} parent=159 // pred_region
          %s1963 = sand.u32 %s722, 1
          %s1964 = scalar_lea.sflag [#allocation4], %s1963
          %s1965 = sand.u32 %s722, 1
          %s1966 = smul.addr %s1965, 8
          %s1967 = scalar_lea.vmem [#allocation14], %s1966
          %1969 = dma.done %s1964, 128
        $region164: #{tpu_custom_call.1} parent=159 // pred_fallthru
          _
      $region160: #{tpu_custom_call.1} parent=5 // pred_fallthru
        _
    $region6: #{tpu_custom_call.1} parent=1 // loop_footer
      %s50 = sadd.s32 1, %s46
    $region7: #{tpu_custom_call.1} parent=1 // loop_footer_branch
      %45 = sbr.rel target = $region3
    $region8: #{tpu_custom_call.1} parent=1 // loop_exit
      _
    %1970 = vsyncpa [#allocation3], 1
    %s1971 = scalar_lea.sflag [#allocation3], 1
    %1972 = vsyncpa %s1971, 1
    %1973 = vsyncpa [#allocation6], 1
    %s1974 = scalar_lea.sflag [#allocation6], 1
    %1975 = vsyncpa %s1974, 1
    %1976 = vsyncpa [#allocation9], 1
    %s1977 = scalar_lea.sflag [#allocation9], 1
    %1978 = vsyncpa %s1977, 1
    %1979 = vsyncpa [#allocation12], 1
    %s1980 = scalar_lea.sflag [#allocation12], 1
    %1981 = vsyncpa %s1980, 1
    %1982 = vsyncpa [#allocation4], 1
    %s1983 = scalar_lea.sflag [#allocation4], 1
    %1984 = vsyncpa %s1983, 1

</llo_original>
